<compile_context>
chip_gen: v7x
topology: tpu7x:2x2x1
jax: 0.10.0
libtpu: 0.0.40
codegen_flags: <defaults>
</compile_context>

<pallas_src>
import functools

import jax
import jax.numpy as jnp
from jax import lax
from jax.experimental import pallas as pl
from jax.experimental.pallas import tpu as pltpu


def _round_up(v, m):
    return (v + m - 1) // m * m


# ----------------------------- Pallas kernel ------------------------------- #
def _convmodule_kernel(x_ref, w_ref, maskc_ref, gmat_ref, gmatT_ref, gamma_ref, beta_ref,
                       o_ref, *, K, Wp, Ls, inv_n, eps):
    # x_ref     : (1, Cin, Lp2)    flat zero-padded image (+ tail slack), compute dtype
    # w_ref     : (K*K, Cout, Cin) conv weight, tap-major, compute dtype
    # maskc_ref : (Ls, 1) f32      1.0 on valid (non W-pad / non tail-pad) output columns
    # gmat_ref  : (G, Cout) f32    group membership (row g sums channels of group g)
    # gmatT_ref : (Cout, G) f32    transpose (broadcasts per-group scalars to channels)
    # gamma_ref : (Cout, 1) f32    GroupNorm scale
    # beta_ref  : (Cout, 1) f32    GroupNorm shift
    # o_ref     : (1, Cout, Ls)    output dtype
    x = x_ref[0]                                                  # (Cin, Lp2)

    # --- conv: K*K accumulating MXU matmuls over lane-shifted views (no im2col buffer) ---
    y = None
    for kh in range(K):
        for kw in range(K):
            t = kh * K + kw
            s = kh * Wp + kw
            tap = jnp.dot(w_ref[t], x[:, s:s + Ls],
                          preferred_element_type=jnp.float32)     # (Cout, Ls) f32
            y = tap if y is None else y + tap                     # v7x: MRB accumulate

    maskc = maskc_ref[...]                                        # (Ls, 1)
    gmat = gmat_ref[...]                                          # (G, Cout)
    gmatT = gmatT_ref[...]                                        # (Cout, G)

    # --- GroupNorm: vectorized two-pass centered variance, MXU lane reductions ---
    s1 = jnp.dot(y, maskc, preferred_element_type=jnp.float32)    # (Cout, 1) masked sums
    mean_c = jnp.dot(gmatT, jnp.dot(gmat, s1)) * inv_n            # (Cout, 1) group mean
    d = y - mean_c
    ssq = jnp.dot(d * d, maskc, preferred_element_type=jnp.float32)  # (Cout, 1) centered SSQ
    var_g = jnp.dot(gmat, ssq) * inv_n                            # (G, 1) biased var (torch GN)
    inv_std_c = jnp.dot(gmatT, lax.rsqrt(var_g + eps))            # (Cout, 1)

    # --- folded affine + ReLU, single full-array pass straight to the output ---
    scale = gamma_ref[...] * inv_std_c                            # (Cout, 1)
    bias = beta_ref[...] - mean_c * scale                         # (Cout, 1)
    o_ref[0] = jnp.maximum(y * scale + bias, 0.0).astype(o_ref.dtype)


# ------------------------------- wrapper ------------------------------------ #
def conv_module_forward(x_nchw, weight, gamma, beta, *, num_groups, eps=1e-5,
                        compute_dtype=jnp.bfloat16, out_dtype=jnp.bfloat16):
    """ConvModule forward: Conv2d(3x3, stride=1, pad=K//2, bias=False) -> GN -> ReLU.

    x_nchw : (N, Cin, H, W) f32
    weight : (Cout, Cin, K, K) f32 (PyTorch conv weight layout)
    gamma, beta : (Cout,) GroupNorm affine params
    returns (N, Cout, H, W) in `out_dtype`
    """
    N, Cin, H, W = x_nchw.shape
    Cout, Cin_w, K, K2 = weight.shape
    assert Cin_w == Cin and K == K2 and K % 2 == 1
    assert Cout % num_groups == 0
    pad = K // 2
    cg = Cout // num_groups
    Hp, Wp = H + 2 * pad, W + 2 * pad
    KK = K * K

    Ls_raw = H * Wp                                   # flat output span (incl. W-pad cols)
    Ls = _round_up(Ls_raw, 128)                       # lane-aligned output span
    max_s = (K - 1) * Wp + (K - 1)                    # largest tap offset
    Lp2 = _round_up(max_s + Ls, 128)                  # flat padded-input length (+ slack)

    # zero-pad spatially and flatten (~1.3x HBM inflation, not 9x im2col)
    xp = jnp.pad(x_nchw, ((0, 0), (0, 0), (pad, pad), (pad, pad)))      # (N, Cin, Hp, Wp)
    xflat = xp.reshape(N, Cin, Hp * Wp)
    xflat = jnp.pad(xflat, ((0, 0), (0, 0), (0, Lp2 - Hp * Wp)))
    xflat = xflat.astype(compute_dtype)

    # conv weight -> tap-major (K*K, Cout, Cin): avoids unaligned lane slices in-kernel
    w3 = jnp.transpose(weight, (2, 3, 0, 1)).reshape(KK, Cout, Cin).astype(compute_dtype)

    # valid-column mask (Ls, 1): excludes W-padding and lane-alignment tail columns
    idx = jnp.arange(Ls, dtype=jnp.int32)
    valid = (idx < Ls_raw) & ((idx % Wp) < W)
    maskc = valid.astype(jnp.float32).reshape(Ls, 1)

    # group membership matrices (tiny)
    ch_group = jnp.arange(Cout, dtype=jnp.int32) // cg
    gmat = (ch_group[None, :] == jnp.arange(num_groups, dtype=jnp.int32)[:, None]
            ).astype(jnp.float32)                                        # (G, Cout)
    gmatT = gmat.T                                                       # (Cout, G)

    gamma2 = gamma.reshape(Cout, 1).astype(jnp.float32)
    beta2 = beta.reshape(Cout, 1).astype(jnp.float32)

    kernel = functools.partial(
        _convmodule_kernel, K=K, Wp=Wp, Ls=Ls,
        inv_n=1.0 / float(cg * H * W), eps=float(eps))

    csize = jnp.dtype(compute_dtype).itemsize
    osize = jnp.dtype(out_dtype).itemsize

    # VMEM: double-buffered blocks + live f32 temporaries (y, d, d*d) + one tap slice
    blk_in = Cin * Lp2 * csize
    blk_w = KK * Cout * Cin * csize
    blk_out = Cout * Ls * osize
    blk_small = (Ls + 2 * Cout + 2 * num_groups * Cout) * 4
    tmp = 3 * Cout * Ls * 4 + Cin * Ls * csize
    vmem_need = 2 * (blk_in + blk_w + blk_out + blk_small) + tmp
    # Cap at 48 MiB (safe on v7x's 64 MiB VMEM); v5e/v6e could raise toward ~96 MiB.
    vmem_limit = int(min(48 * 2 ** 20, max(16 * 2 ** 20, 2 * vmem_need)))

    cost = pl.CostEstimate(
        flops=2 * N * KK * Cout * Cin * Ls + 4 * N * Cout * Ls,
        transcendentals=N * num_groups,
        bytes_accessed=(N * Cin * Lp2 * csize + KK * Cout * Cin * csize
                        + N * Cout * Ls * osize
                        + (Ls + 2 * Cout + 2 * num_groups * Cout) * 4))

    out_flat = pl.pallas_call(
        kernel,
        out_shape=jax.ShapeDtypeStruct((N, Cout, Ls), out_dtype),
        grid_spec=pltpu.PrefetchScalarGridSpec(
            num_scalar_prefetch=0,
            grid=(N,),
            in_specs=[
                pl.BlockSpec((1, Cin, Lp2), lambda n: (n, 0, 0)),
                pl.BlockSpec((KK, Cout, Cin), lambda n: (0, 0, 0)),
                pl.BlockSpec((Ls, 1), lambda n: (0, 0)),
                pl.BlockSpec((num_groups, Cout), lambda n: (0, 0)),
                pl.BlockSpec((Cout, num_groups), lambda n: (0, 0)),
                pl.BlockSpec((Cout, 1), lambda n: (0, 0)),
                pl.BlockSpec((Cout, 1), lambda n: (0, 0)),
            ],
            out_specs=pl.BlockSpec((1, Cout, Ls), lambda n: (n, 0, 0)),
        ),
        compiler_params=pltpu.CompilerParams(
            dimension_semantics=("parallel",),
            vmem_limit_bytes=vmem_limit),
        cost_estimate=cost,
    )(xflat, w3, maskc, gmat, gmatT, gamma2, beta2)

    # (N, Cout, Ls) -> NCHW by dropping tail + W-padding columns (channel-major already,
    # no transpose).  TODO(synk): fuse this unpad into the consumer to skip the extra copy.
    out = out_flat[:, :, :Ls_raw].reshape(N, Cout, H, Wp)[:, :, :, :W]
    return out


# ----------------------------- reference (jnp) ------------------------------ #
def _reference(x_nchw, weight, gamma, beta, *, num_groups, eps=1e-5):
    y = lax.conv_general_dilated(
        x_nchw, weight, window_strides=(1, 1), padding=((1, 1), (1, 1)),
        dimension_numbers=("NCHW", "OIHW", "NCHW"))
    N, C, H, W = y.shape
    cg = C // num_groups
    yg = y.reshape(N, num_groups, cg * H * W)
    mean = yg.mean(axis=-1, keepdims=True)
    var = ((yg - mean) ** 2).mean(axis=-1, keepdims=True)
    yn = ((yg - mean) / jnp.sqrt(var + eps)).reshape(N, C, H, W)
    yn = yn * gamma.reshape(1, C, 1, 1) + beta.reshape(1, C, 1, 1)
    return jnp.maximum(yn, 0.0)


if __name__ == "__main__":
    # ConvModule(in_channels=4, out_channels=8, kernel_size=3, padding=1,
    #            norm_cfg=dict(type='GN', num_groups=4), act_cfg=dict(type='ReLU'))
    N, Cin, H, W = 2, 4, 16, 16
    Cout, K = 8, 3
    num_groups = 4

    key = jax.random.PRNGKey(0)
    kx, kw = jax.random.split(key)
    x = jax.random.normal(kx, (N, Cin, H, W), dtype=jnp.float32)

    # Kaiming-normal init (fan_in, relu) for conv weight; bias=False (norm present).
    fan_in = Cin * K * K
    w = jax.random.normal(kw, (Cout, Cin, K, K), dtype=jnp.float32) * jnp.sqrt(2.0 / fan_in)
    # GroupNorm constant_init: gamma=1, beta=0
    gamma = jnp.ones((Cout,), dtype=jnp.float32)
    beta = jnp.zeros((Cout,), dtype=jnp.float32)

    ref = _reference(x, w, gamma, beta, num_groups=num_groups)

    # f32 MXU path: tight numerical check against the XLA reference.
    fwd_f32 = jax.jit(functools.partial(conv_module_forward, num_groups=num_groups,
                                        compute_dtype=jnp.float32, out_dtype=jnp.float32))
    out_f32 = jax.block_until_ready(fwd_f32(x, w, gamma, beta))
    assert out_f32.shape == (N, Cout, H, W)
    assert jnp.allclose(out_f32, ref, atol=2e-4, rtol=2e-4), \
        f"f32 max abs diff {jnp.max(jnp.abs(out_f32 - ref))}"

    # bf16 MXU operands + bf16 output (default perf configuration): looser tolerance.
    fwd_bf16 = jax.jit(functools.partial(conv_module_forward, num_groups=num_groups))
    out_bf16 = jax.block_until_ready(fwd_bf16(x, w, gamma, beta))
    assert out_bf16.shape == (N, Cout, H, W)
    assert out_bf16.dtype == jnp.bfloat16
    assert jnp.allclose(out_bf16.astype(jnp.float32), ref, atol=4e-2, rtol=4e-2), \
        f"bf16 max abs diff {jnp.max(jnp.abs(out_bf16.astype(jnp.float32) - ref))}"

    print("KERNEL_OK")
</pallas_src>

<mosaic_0001>
module attributes {stable_mosaic.version = 11 : i64} {
  func.func @_convmodule_kernel(%arg0: i32, %arg1: memref<1x4x512xf32, #tpu.memory_space<vmem>>, %arg2: memref<9x8x4xf32, #tpu.memory_space<vmem>>, %arg3: memref<384x1xf32, #tpu.memory_space<vmem>>, %arg4: memref<4x8xf32, #tpu.memory_space<vmem>>, %arg5: memref<8x4xf32, #tpu.memory_space<vmem>>, %arg6: memref<8x1xf32, #tpu.memory_space<vmem>>, %arg7: memref<8x1xf32, #tpu.memory_space<vmem>>, %arg8: memref<1x8x384xf32, #tpu.memory_space<vmem>>) attributes {dimension_semantics = [#tpu.dimension_semantics<parallel>], iteration_bounds = array<i64: 2>, scalar_prefetch = 0 : i64, scratch_operands = 0 : i64, tpu.core_type = #tpu.core_type<tc>, window_params = [{transform_indices = @transform_0, window_bounds = array<i64: 1, 4, 512>}, {pipeline_mode = #tpu.pipeline_mode<synchronous>, transform_indices = @transform_1, window_bounds = array<i64: 9, 8, 4>}, {pipeline_mode = #tpu.pipeline_mode<synchronous>, transform_indices = @transform_2, window_bounds = array<i64: 384, 1>}, {pipeline_mode = #tpu.pipeline_mode<synchronous>, transform_indices = @transform_3, window_bounds = array<i64: 4, 8>}, {pipeline_mode = #tpu.pipeline_mode<synchronous>, transform_indices = @transform_4, window_bounds = array<i64: 8, 4>}, {pipeline_mode = #tpu.pipeline_mode<synchronous>, transform_indices = @transform_5, window_bounds = array<i64: 8, 1>}, {pipeline_mode = #tpu.pipeline_mode<synchronous>, transform_indices = @transform_6, window_bounds = array<i64: 8, 1>}, {transform_indices = @transform_7, window_bounds = array<i64: 1, 8, 384>}]} {
    %c0 = arith.constant 0 : index
    %c0_0 = arith.constant 0 : index
    %c0_1 = arith.constant 0 : index
    %0 = vector.load %arg1[%c0, %c0_0, %c0_1] : memref<1x4x512xf32, #tpu.memory_space<vmem>>, vector<1x4x512xf32>
    %1 = vector.shape_cast %0 : vector<1x4x512xf32> to vector<4x512xf32>
    %c0_2 = arith.constant 0 : index
    %c0_3 = arith.constant 0 : index
    %c0_4 = arith.constant 0 : index
    %2 = vector.load %arg2[%c0_2, %c0_3, %c0_4] : memref<9x8x4xf32, #tpu.memory_space<vmem>>, vector<1x8x4xf32>
    %3 = vector.shape_cast %2 : vector<1x8x4xf32> to vector<8x4xf32>
    %4 = vector.extract_strided_slice %1 {offsets = [0, 0], sizes = [4, 384], strides = [1, 1]} : vector<4x512xf32> to vector<4x384xf32>
    %cst = arith.constant dense<0.000000e+00> : vector<8x384xf32>
    %5 = tpu.matmul %3, %4, %cst {dimension_numbers = #tpu.dot_dimension_numbers<[1], [0], [0], [1], [0, 0, 1, 1], [], []>} : vector<8x4xf32>, vector<4x384xf32>, vector<8x384xf32> -> vector<8x384xf32>
    %c1 = arith.constant 1 : index
    %c0_5 = arith.constant 0 : index
    %c0_6 = arith.constant 0 : index
    %6 = vector.load %arg2[%c1, %c0_5, %c0_6] : memref<9x8x4xf32, #tpu.memory_space<vmem>>, vector<1x8x4xf32>
    %7 = vector.shape_cast %6 : vector<1x8x4xf32> to vector<8x4xf32>
    %8 = vector.extract_strided_slice %1 {offsets = [0, 1], sizes = [4, 384], strides = [1, 1]} : vector<4x512xf32> to vector<4x384xf32>
    %cst_7 = arith.constant dense<0.000000e+00> : vector<8x384xf32>
    %9 = tpu.matmul %7, %8, %cst_7 {dimension_numbers = #tpu.dot_dimension_numbers<[1], [0], [0], [1], [0, 0, 1, 1], [], []>} : vector<8x4xf32>, vector<4x384xf32>, vector<8x384xf32> -> vector<8x384xf32>
    %10 = arith.addf %5, %9 : vector<8x384xf32>
    %c2 = arith.constant 2 : index
    %c0_8 = arith.constant 0 : index
    %c0_9 = arith.constant 0 : index
    %11 = vector.load %arg2[%c2, %c0_8, %c0_9] : memref<9x8x4xf32, #tpu.memory_space<vmem>>, vector<1x8x4xf32>
    %12 = vector.shape_cast %11 : vector<1x8x4xf32> to vector<8x4xf32>
    %13 = vector.extract_strided_slice %1 {offsets = [0, 2], sizes = [4, 384], strides = [1, 1]} : vector<4x512xf32> to vector<4x384xf32>
    %cst_10 = arith.constant dense<0.000000e+00> : vector<8x384xf32>
    %14 = tpu.matmul %12, %13, %cst_10 {dimension_numbers = #tpu.dot_dimension_numbers<[1], [0], [0], [1], [0, 0, 1, 1], [], []>} : vector<8x4xf32>, vector<4x384xf32>, vector<8x384xf32> -> vector<8x384xf32>
    %15 = arith.addf %10, %14 : vector<8x384xf32>
    %c3 = arith.constant 3 : index
    %c0_11 = arith.constant 0 : index
    %c0_12 = arith.constant 0 : index
    %16 = vector.load %arg2[%c3, %c0_11, %c0_12] : memref<9x8x4xf32, #tpu.memory_space<vmem>>, vector<1x8x4xf32>
    %17 = vector.shape_cast %16 : vector<1x8x4xf32> to vector<8x4xf32>
    %18 = vector.extract_strided_slice %1 {offsets = [0, 18], sizes = [4, 384], strides = [1, 1]} : vector<4x512xf32> to vector<4x384xf32>
    %cst_13 = arith.constant dense<0.000000e+00> : vector<8x384xf32>
    %19 = tpu.matmul %17, %18, %cst_13 {dimension_numbers = #tpu.dot_dimension_numbers<[1], [0], [0], [1], [0, 0, 1, 1], [], []>} : vector<8x4xf32>, vector<4x384xf32>, vector<8x384xf32> -> vector<8x384xf32>
    %20 = arith.addf %15, %19 : vector<8x384xf32>
    %c4 = arith.constant 4 : index
    %c0_14 = arith.constant 0 : index
    %c0_15 = arith.constant 0 : index
    %21 = vector.load %arg2[%c4, %c0_14, %c0_15] : memref<9x8x4xf32, #tpu.memory_space<vmem>>, vector<1x8x4xf32>
    %22 = vector.shape_cast %21 : vector<1x8x4xf32> to vector<8x4xf32>
    %23 = vector.extract_strided_slice %1 {offsets = [0, 19], sizes = [4, 384], strides = [1, 1]} : vector<4x512xf32> to vector<4x384xf32>
    %cst_16 = arith.constant dense<0.000000e+00> : vector<8x384xf32>
    %24 = tpu.matmul %22, %23, %cst_16 {dimension_numbers = #tpu.dot_dimension_numbers<[1], [0], [0], [1], [0, 0, 1, 1], [], []>} : vector<8x4xf32>, vector<4x384xf32>, vector<8x384xf32> -> vector<8x384xf32>
    %25 = arith.addf %20, %24 : vector<8x384xf32>
    %c5 = arith.constant 5 : index
    %c0_17 = arith.constant 0 : index
    %c0_18 = arith.constant 0 : index
    %26 = vector.load %arg2[%c5, %c0_17, %c0_18] : memref<9x8x4xf32, #tpu.memory_space<vmem>>, vector<1x8x4xf32>
    %27 = vector.shape_cast %26 : vector<1x8x4xf32> to vector<8x4xf32>
    %28 = vector.extract_strided_slice %1 {offsets = [0, 20], sizes = [4, 384], strides = [1, 1]} : vector<4x512xf32> to vector<4x384xf32>
    %cst_19 = arith.constant dense<0.000000e+00> : vector<8x384xf32>
    %29 = tpu.matmul %27, %28, %cst_19 {dimension_numbers = #tpu.dot_dimension_numbers<[1], [0], [0], [1], [0, 0, 1, 1], [], []>} : vector<8x4xf32>, vector<4x384xf32>, vector<8x384xf32> -> vector<8x384xf32>
    %30 = arith.addf %25, %29 : vector<8x384xf32>
    %c6 = arith.constant 6 : index
    %c0_20 = arith.constant 0 : index
    %c0_21 = arith.constant 0 : index
    %31 = vector.load %arg2[%c6, %c0_20, %c0_21] : memref<9x8x4xf32, #tpu.memory_space<vmem>>, vector<1x8x4xf32>
    %32 = vector.shape_cast %31 : vector<1x8x4xf32> to vector<8x4xf32>
    %33 = vector.extract_strided_slice %1 {offsets = [0, 36], sizes = [4, 384], strides = [1, 1]} : vector<4x512xf32> to vector<4x384xf32>
    %cst_22 = arith.constant dense<0.000000e+00> : vector<8x384xf32>
    %34 = tpu.matmul %32, %33, %cst_22 {dimension_numbers = #tpu.dot_dimension_numbers<[1], [0], [0], [1], [0, 0, 1, 1], [], []>} : vector<8x4xf32>, vector<4x384xf32>, vector<8x384xf32> -> vector<8x384xf32>
    %35 = arith.addf %30, %34 : vector<8x384xf32>
    %c7 = arith.constant 7 : index
    %c0_23 = arith.constant 0 : index
    %c0_24 = arith.constant 0 : index
    %36 = vector.load %arg2[%c7, %c0_23, %c0_24] : memref<9x8x4xf32, #tpu.memory_space<vmem>>, vector<1x8x4xf32>
    %37 = vector.shape_cast %36 : vector<1x8x4xf32> to vector<8x4xf32>
    %38 = vector.extract_strided_slice %1 {offsets = [0, 37], sizes = [4, 384], strides = [1, 1]} : vector<4x512xf32> to vector<4x384xf32>
    %cst_25 = arith.constant dense<0.000000e+00> : vector<8x384xf32>
    %39 = tpu.matmul %37, %38, %cst_25 {dimension_numbers = #tpu.dot_dimension_numbers<[1], [0], [0], [1], [0, 0, 1, 1], [], []>} : vector<8x4xf32>, vector<4x384xf32>, vector<8x384xf32> -> vector<8x384xf32>
    %40 = arith.addf %35, %39 : vector<8x384xf32>
    %c8 = arith.constant 8 : index
    %c0_26 = arith.constant 0 : index
    %c0_27 = arith.constant 0 : index
    %41 = vector.load %arg2[%c8, %c0_26, %c0_27] : memref<9x8x4xf32, #tpu.memory_space<vmem>>, vector<1x8x4xf32>
    %42 = vector.shape_cast %41 : vector<1x8x4xf32> to vector<8x4xf32>
    %43 = vector.extract_strided_slice %1 {offsets = [0, 38], sizes = [4, 384], strides = [1, 1]} : vector<4x512xf32> to vector<4x384xf32>
    %cst_28 = arith.constant dense<0.000000e+00> : vector<8x384xf32>
    %44 = tpu.matmul %42, %43, %cst_28 {dimension_numbers = #tpu.dot_dimension_numbers<[1], [0], [0], [1], [0, 0, 1, 1], [], []>} : vector<8x4xf32>, vector<4x384xf32>, vector<8x384xf32> -> vector<8x384xf32>
    %45 = arith.addf %40, %44 : vector<8x384xf32>
    %c0_29 = arith.constant 0 : index
    %c0_30 = arith.constant 0 : index
    %46 = vector.load %arg3[%c0_29, %c0_30] : memref<384x1xf32, #tpu.memory_space<vmem>>, vector<384x1xf32>
    %c0_31 = arith.constant 0 : index
    %c0_32 = arith.constant 0 : index
    %47 = vector.load %arg4[%c0_31, %c0_32] : memref<4x8xf32, #tpu.memory_space<vmem>>, vector<4x8xf32>
    %c0_33 = arith.constant 0 : index
    %c0_34 = arith.constant 0 : index
    %48 = vector.load %arg5[%c0_33, %c0_34] : memref<8x4xf32, #tpu.memory_space<vmem>>, vector<8x4xf32>
    %cst_35 = arith.constant dense<0.000000e+00> : vector<8x1xf32>
    %49 = tpu.matmul %45, %46, %cst_35 {dimension_numbers = #tpu.dot_dimension_numbers<[1], [0], [0], [1], [0, 0, 1, 1], [], []>} : vector<8x384xf32>, vector<384x1xf32>, vector<8x1xf32> -> vector<8x1xf32>
    %cst_36 = arith.constant dense<0.000000e+00> : vector<4x1xf32>
    %50 = tpu.matmul %47, %49, %cst_36 {dimension_numbers = #tpu.dot_dimension_numbers<[1], [0], [0], [1], [0, 0, 1, 1], [], []>} : vector<4x8xf32>, vector<8x1xf32>, vector<4x1xf32> -> vector<4x1xf32>
    %cst_37 = arith.constant dense<0.000000e+00> : vector<8x1xf32>
    %51 = tpu.matmul %48, %50, %cst_37 {dimension_numbers = #tpu.dot_dimension_numbers<[1], [0], [0], [1], [0, 0, 1, 1], [], []>} : vector<8x4xf32>, vector<4x1xf32>, vector<8x1xf32> -> vector<8x1xf32>
    %cst_38 = arith.constant 0.001953125 : f32
    %52 = vector.broadcast %cst_38 : f32 to vector<8x1xf32>
    %53 = arith.mulf %51, %52 : vector<8x1xf32>
    %54 = vector.broadcast %53 : vector<8x1xf32> to vector<8x384xf32>
    %55 = arith.subf %45, %54 : vector<8x384xf32>
    %56 = arith.mulf %55, %55 : vector<8x384xf32>
    %cst_39 = arith.constant dense<0.000000e+00> : vector<8x1xf32>
    %57 = tpu.matmul %56, %46, %cst_39 {dimension_numbers = #tpu.dot_dimension_numbers<[1], [0], [0], [1], [0, 0, 1, 1], [], []>} : vector<8x384xf32>, vector<384x1xf32>, vector<8x1xf32> -> vector<8x1xf32>
    %cst_40 = arith.constant dense<0.000000e+00> : vector<4x1xf32>
    %58 = tpu.matmul %47, %57, %cst_40 {dimension_numbers = #tpu.dot_dimension_numbers<[1], [0], [0], [1], [0, 0, 1, 1], [], []>} : vector<4x8xf32>, vector<8x1xf32>, vector<4x1xf32> -> vector<4x1xf32>
    %cst_41 = arith.constant 0.001953125 : f32
    %59 = vector.broadcast %cst_41 : f32 to vector<4x1xf32>
    %60 = arith.mulf %58, %59 : vector<4x1xf32>
    %cst_42 = arith.constant 9.99999974E-6 : f32
    %61 = vector.broadcast %cst_42 : f32 to vector<4x1xf32>
    %62 = arith.addf %60, %61 : vector<4x1xf32>
    %63 = math.rsqrt %62 : vector<4x1xf32>
    %cst_43 = arith.constant dense<0.000000e+00> : vector<8x1xf32>
    %64 = tpu.matmul %48, %63, %cst_43 {dimension_numbers = #tpu.dot_dimension_numbers<[1], [0], [0], [1], [0, 0, 1, 1], [], []>} : vector<8x4xf32>, vector<4x1xf32>, vector<8x1xf32> -> vector<8x1xf32>
    %c0_44 = arith.constant 0 : index
    %c0_45 = arith.constant 0 : index
    %65 = vector.load %arg6[%c0_44, %c0_45] : memref<8x1xf32, #tpu.memory_space<vmem>>, vector<8x1xf32>
    %66 = arith.mulf %65, %64 : vector<8x1xf32>
    %c0_46 = arith.constant 0 : index
    %c0_47 = arith.constant 0 : index
    %67 = vector.load %arg7[%c0_46, %c0_47] : memref<8x1xf32, #tpu.memory_space<vmem>>, vector<8x1xf32>
    %68 = arith.mulf %53, %66 : vector<8x1xf32>
    %69 = arith.subf %67, %68 : vector<8x1xf32>
    %70 = vector.broadcast %66 : vector<8x1xf32> to vector<8x384xf32>
    %71 = arith.mulf %45, %70 : vector<8x384xf32>
    %72 = vector.broadcast %69 : vector<8x1xf32> to vector<8x384xf32>
    %73 = arith.addf %71, %72 : vector<8x384xf32>
    %cst_48 = arith.constant 0.000000e+00 : f32
    %74 = vector.broadcast %cst_48 : f32 to vector<8x384xf32>
    %75 = arith.maximumf %73, %74 : vector<8x384xf32>
    %c0_49 = arith.constant 0 : index
    %c0_50 = arith.constant 0 : index
    %c0_51 = arith.constant 0 : index
    %76 = vector.load %arg8[%c0_49, %c0_50, %c0_51] : memref<1x8x384xf32, #tpu.memory_space<vmem>>, vector<1x8x384xf32>
    %77 = vector.shape_cast %76 : vector<1x8x384xf32> to vector<8x384xf32>
    %78 = vector.shape_cast %75 : vector<8x384xf32> to vector<1x8x384xf32>
    tpu.vector_store %arg8[%c0_49, %c0_50, %c0_51], %78 {strides = array<i32>} : memref<1x8x384xf32, #tpu.memory_space<vmem>>, vector<1x8x384xf32>,
    return
  }
  func.func @transform_0(%arg0: i32) -> (i32, i32, i32) {
    %c0_i32 = arith.constant 0 : i32
    %c0_i32_0 = arith.constant 0 : i32
    %c0_i32_1 = arith.constant 0 : i32
    return %arg0, %c0_i32, %c0_i32_0 : i32, i32, i32
  }
  func.func @transform_1(%arg0: i32) -> (i32, i32, i32) {
    %c0_i32 = arith.constant 0 : i32
    %c0_i32_0 = arith.constant 0 : i32
    %c0_i32_1 = arith.constant 0 : i32
    %c0_i32_2 = arith.constant 0 : i32
    return %c0_i32, %c0_i32_0, %c0_i32_1 : i32, i32, i32
  }
  func.func @transform_2(%arg0: i32) -> (i32, i32) {
    %c0_i32 = arith.constant 0 : i32
    %c0_i32_0 = arith.constant 0 : i32
    %c0_i32_1 = arith.constant 0 : i32
    return %c0_i32, %c0_i32_0 : i32, i32
  }
  func.func @transform_3(%arg0: i32) -> (i32, i32) {
    %c0_i32 = arith.constant 0 : i32
    %c0_i32_0 = arith.constant 0 : i32
    %c0_i32_1 = arith.constant 0 : i32
    return %c0_i32, %c0_i32_0 : i32, i32
  }
  func.func @transform_4(%arg0: i32) -> (i32, i32) {
    %c0_i32 = arith.constant 0 : i32
    %c0_i32_0 = arith.constant 0 : i32
    %c0_i32_1 = arith.constant 0 : i32
    return %c0_i32, %c0_i32_0 : i32, i32
  }
  func.func @transform_5(%arg0: i32) -> (i32, i32) {
    %c0_i32 = arith.constant 0 : i32
    %c0_i32_0 = arith.constant 0 : i32
    %c0_i32_1 = arith.constant 0 : i32
    return %c0_i32, %c0_i32_0 : i32, i32
  }
  func.func @transform_6(%arg0: i32) -> (i32, i32) {
    %c0_i32 = arith.constant 0 : i32
    %c0_i32_0 = arith.constant 0 : i32
    %c0_i32_1 = arith.constant 0 : i32
    return %c0_i32, %c0_i32_0 : i32, i32
  }
  func.func @transform_7(%arg0: i32) -> (i32, i32, i32) {
    %c0_i32 = arith.constant 0 : i32
    %c0_i32_0 = arith.constant 0 : i32
    %c0_i32_1 = arith.constant 0 : i32
    return %arg0, %c0_i32, %c0_i32_0 : i32, i32, i32
  }
}

</mosaic_0001>

<llo_original>
// kernel: conv_module_forward.1
$region0: #{conv_module_forward.1}
  #allocation0 [shape = 'u32[]', space=smem, size = 0x4, offset = 0x4, fixed_abs, tag = 'smem constant byte address 0x4 - core index']
  #allocation1 [shape = 'u32[144,128]{1,0:T(1,128)}', space=vmem, size = 0x12000, scoped, tag = 'internal scratch']
  %s0 = inlined_call_operand.vmem [shape: f32[2,4,512], index: 0, kind: input, shape index: {}]
  %s1 = inlined_call_operand.vmem [shape: f32[9,8,4], index: 1, kind: input, shape index: {}]
  %s2 = inlined_call_operand.vmem [shape: f32[384,1], index: 2, kind: input, shape index: {}]
  %s3 = inlined_call_operand.vmem [shape: f32[4,8], index: 3, kind: input, shape index: {}]
  %s4 = inlined_call_operand.vmem [shape: f32[8,4], index: 4, kind: input, shape index: {}]
  %s5 = inlined_call_operand.vmem [shape: f32[8,1], index: 5, kind: input, shape index: {}]
  %s6 = inlined_call_operand.vmem [shape: f32[8,1], index: 6, kind: input, shape index: {}]
  %s7 = inlined_call_operand.vmem [shape: f32[2,8,384], index: 7, kind: output, shape index: {}]
  %s8 = sld [smem:[#allocation0]]
  $region61: #{conv_module_forward.1} parent=0
    _
  %s10 = ssub.s32 1, %s8
  %s11 = scalar_select 0, %s10, %s8
  loop: start=0, step=1, limit=4
  $region2: #{conv_module_forward.1} parent=0 // loop_pre_header
    _
  $region3: #{conv_module_forward.1} parent=0 // loop_header
    %s13 = sphi 0, %s17
    %p14 = scmp.ge.s32.totalorder %s13, 4
    %s23 = sphi 0, %s25
    %s26 = sphi 0, %s23
    %s27 = sphi 0, %s26
    %s43 = sphi 0, %s27
    %s47 = sphi 0, %s47
    %s49 = sphi 0, %s47
    %s50 = sphi 0, %s49
    %s64 = sphi 0, %s50
    %s68 = sphi 0, %s68
    %s70 = sphi 0, %s68
    %s71 = sphi 0, %s70
    %s85 = sphi 0, %s71
    %s89 = sphi 0, %s89
    %s91 = sphi 0, %s89
    %s92 = sphi 0, %s91
    %s106 = sphi 0, %s92
    %s110 = sphi 0, %s110
    %s112 = sphi 0, %s110
    %s113 = sphi 0, %s112
    %s127 = sphi 0, %s113
    %s131 = sphi 0, %s131
    %s133 = sphi 0, %s131
    %s134 = sphi 0, %s133
    %s148 = sphi 0, %s134
    %s152 = sphi 0, %s152
    %s154 = sphi 0, %s152
    %s155 = sphi 0, %s154
    %s169 = sphi 0, %s155
    %s175 = sphi 0, %s177
    %s178 = sphi 0, %s175
    %s179 = sphi 0, %s178
    %s195 = sphi 0, %s179
  $region4: #{conv_module_forward.1} parent=0 // loop_header_branch
    %16 = sbr.rel (%p14) target = $region8
  $region5: #{conv_module_forward.1} parent=0 // loop_body
    %s18 = ssub.s32 %s13, 1
    %s19 = ssub.s32 %s13, 2
    %s20 = sadd.s32 %s13, 1
    %s21 = ssub.s32 %s13, %s20
    %p22 = scmp.eq.s32.totalorder %s21, 0
    %s24 = sadd.s32 %s23, 1
    %s25 = scalar_select %p22, %s23, %s24
    %p28 = pneg %p22
    %p29 = scmp.eq.s32.totalorder %s13, 1
    %p30 = por %p28, %p29
    %p31 = scmp.ne.s32.totalorder %s23, %s26
    %p32 = scmp.eq.s32.totalorder %s13, 0
    %p33 = por %p31, %p32
    %p34 = scmp.ne.s32.totalorder %s23, %s26
    %p35 = scmp.eq.s32.totalorder %s18, 1
    %p36 = por %p34, %p35
    %p37 = scmp.ne.s32.totalorder %s26, %s27
    %p38 = scmp.eq.s32.totalorder %s18, 0
    %p39 = por %p37, %p38
    %p40 = scmp.ne.s32.totalorder %s26, %s27
    %p41 = scmp.eq.s32.totalorder %s19, 1
    %p42 = por %p40, %p41
    %p44 = scmp.ne.s32.totalorder %s27, %s43
    %p45 = scmp.eq.s32.totalorder %s19, 0
    %p46 = por %p44, %p45
    %s48 = sadd.s32 %s47, 1
    %p51 = scmp.eq.s32.totalorder %s13, 1
    %p52 = scmp.ne.s32.totalorder %s47, %s49
    %p53 = scmp.eq.s32.totalorder %s13, 0
    %p54 = por %p52, %p53
    %p55 = scmp.ne.s32.totalorder %s47, %s49
    %p56 = scmp.eq.s32.totalorder %s18, 1
    %p57 = por %p55, %p56
    %p58 = scmp.ne.s32.totalorder %s49, %s50
    %p59 = scmp.eq.s32.totalorder %s18, 0
    %p60 = por %p58, %p59
    %p61 = scmp.ne.s32.totalorder %s49, %s50
    %p62 = scmp.eq.s32.totalorder %s19, 1
    %p63 = por %p61, %p62
    %p65 = scmp.ne.s32.totalorder %s50, %s64
    %p66 = scmp.eq.s32.totalorder %s19, 0
    %p67 = por %p65, %p66
    %s69 = sadd.s32 %s68, 1
    %p72 = scmp.eq.s32.totalorder %s13, 1
    %p73 = scmp.ne.s32.totalorder %s68, %s70
    %p74 = scmp.eq.s32.totalorder %s13, 0
    %p75 = por %p73, %p74
    %p76 = scmp.ne.s32.totalorder %s68, %s70
    %p77 = scmp.eq.s32.totalorder %s18, 1
    %p78 = por %p76, %p77
    %p79 = scmp.ne.s32.totalorder %s70, %s71
    %p80 = scmp.eq.s32.totalorder %s18, 0
    %p81 = por %p79, %p80
    %p82 = scmp.ne.s32.totalorder %s70, %s71
    %p83 = scmp.eq.s32.totalorder %s19, 1
    %p84 = por %p82, %p83
    %p86 = scmp.ne.s32.totalorder %s71, %s85
    %p87 = scmp.eq.s32.totalorder %s19, 0
    %p88 = por %p86, %p87
    %s90 = sadd.s32 %s89, 1
    %p93 = scmp.eq.s32.totalorder %s13, 1
    %p94 = scmp.ne.s32.totalorder %s89, %s91
    %p95 = scmp.eq.s32.totalorder %s13, 0
    %p96 = por %p94, %p95
    %p97 = scmp.ne.s32.totalorder %s89, %s91
    %p98 = scmp.eq.s32.totalorder %s18, 1
    %p99 = por %p97, %p98
    %p100 = scmp.ne.s32.totalorder %s91, %s92
    %p101 = scmp.eq.s32.totalorder %s18, 0
    %p102 = por %p100, %p101
    %p103 = scmp.ne.s32.totalorder %s91, %s92
    %p104 = scmp.eq.s32.totalorder %s19, 1
    %p105 = por %p103, %p104
    %p107 = scmp.ne.s32.totalorder %s92, %s106
    %p108 = scmp.eq.s32.totalorder %s19, 0
    %p109 = por %p107, %p108
    %s111 = sadd.s32 %s110, 1
    %p114 = scmp.eq.s32.totalorder %s13, 1
    %p115 = scmp.ne.s32.totalorder %s110, %s112
    %p116 = scmp.eq.s32.totalorder %s13, 0
    %p117 = por %p115, %p116
    %p118 = scmp.ne.s32.totalorder %s110, %s112
    %p119 = scmp.eq.s32.totalorder %s18, 1
    %p120 = por %p118, %p119
    %p121 = scmp.ne.s32.totalorder %s112, %s113
    %p122 = scmp.eq.s32.totalorder %s18, 0
    %p123 = por %p121, %p122
    %p124 = scmp.ne.s32.totalorder %s112, %s113
    %p125 = scmp.eq.s32.totalorder %s19, 1
    %p126 = por %p124, %p125
    %p128 = scmp.ne.s32.totalorder %s113, %s127
    %p129 = scmp.eq.s32.totalorder %s19, 0
    %p130 = por %p128, %p129
    %s132 = sadd.s32 %s131, 1
    %p135 = scmp.eq.s32.totalorder %s13, 1
    %p136 = scmp.ne.s32.totalorder %s131, %s133
    %p137 = scmp.eq.s32.totalorder %s13, 0
    %p138 = por %p136, %p137
    %p139 = scmp.ne.s32.totalorder %s131, %s133
    %p140 = scmp.eq.s32.totalorder %s18, 1
    %p141 = por %p139, %p140
    %p142 = scmp.ne.s32.totalorder %s133, %s134
    %p143 = scmp.eq.s32.totalorder %s18, 0
    %p144 = por %p142, %p143
    %p145 = scmp.ne.s32.totalorder %s133, %s134
    %p146 = scmp.eq.s32.totalorder %s19, 1
    %p147 = por %p145, %p146
    %p149 = scmp.ne.s32.totalorder %s134, %s148
    %p150 = scmp.eq.s32.totalorder %s19, 0
    %p151 = por %p149, %p150
    %s153 = sadd.s32 %s152, 1
    %p156 = scmp.eq.s32.totalorder %s13, 1
    %p157 = scmp.ne.s32.totalorder %s152, %s154
    %p158 = scmp.eq.s32.totalorder %s13, 0
    %p159 = por %p157, %p158
    %p160 = scmp.ne.s32.totalorder %s152, %s154
    %p161 = scmp.eq.s32.totalorder %s18, 1
    %p162 = por %p160, %p161
    %p163 = scmp.ne.s32.totalorder %s154, %s155
    %p164 = scmp.eq.s32.totalorder %s18, 0
    %p165 = por %p163, %p164
    %p166 = scmp.ne.s32.totalorder %s154, %s155
    %p167 = scmp.eq.s32.totalorder %s19, 1
    %p168 = por %p166, %p167
    %p170 = scmp.ne.s32.totalorder %s155, %s169
    %p171 = scmp.eq.s32.totalorder %s19, 0
    %p172 = por %p170, %p171
    %s173 = ssub.s32 %s13, %s20
    %p174 = scmp.eq.s32.totalorder %s173, 0
    %s176 = sadd.s32 %s175, 1
    %s177 = scalar_select %p174, %s175, %s176
    %p180 = pneg %p174
    %p181 = scmp.eq.s32.totalorder %s13, 1
    %p182 = por %p180, %p181
    %p183 = scmp.ne.s32.totalorder %s175, %s178
    %p184 = scmp.eq.s32.totalorder %s13, 0
    %p185 = por %p183, %p184
    %p186 = scmp.ne.s32.totalorder %s175, %s178
    %p187 = scmp.eq.s32.totalorder %s18, 1
    %p188 = por %p186, %p187
    %p189 = scmp.ne.s32.totalorder %s178, %s179
    %p190 = scmp.eq.s32.totalorder %s18, 0
    %p191 = por %p189, %p190
    %p192 = scmp.ne.s32.totalorder %s178, %s179
    %p193 = scmp.eq.s32.totalorder %s19, 1
    %p194 = por %p192, %p193
    %p196 = scmp.ne.s32.totalorder %s179, %s195
    %p197 = scmp.eq.s32.totalorder %s19, 0
    %p198 = por %p196, %p197
    %p199 = scmp.le.s32.totalorder 1, %s13
    %p200 = scmp.lt.s32.totalorder %s13, 3
    %p201 = pnand %p199, %p200
    %p202 = pneg %p201
    // Predicated region
    $region9: #{conv_module_forward.1} parent=5 // pred_check
      _
    $region10: #{conv_module_forward.1} parent=5 // pred_check_branch
      %204 = sbr.rel (%p201) target = $region12
    $region11: #{conv_module_forward.1} parent=5 // pred_region
      %s205 = ssub.s32 %s13, 1
      // Predicated region
      $region13: #{conv_module_forward.1} parent=11 // pred_check
        %p206 = pneg %p60
      $region14: #{conv_module_forward.1} parent=11 // pred_check_branch
        %208 = sbr.rel (%p206) target = $region16
      $region15: #{conv_module_forward.1} parent=11 // pred_region
        _
      $region16: #{conv_module_forward.1} parent=11 // pred_fallthru
        _
      // Predicated region
      $region17: #{conv_module_forward.1} parent=11 // pred_check
        %p209 = pneg %p81
      $region18: #{conv_module_forward.1} parent=11 // pred_check_branch
        %211 = sbr.rel (%p209) target = $region20
      $region19: #{conv_module_forward.1} parent=11 // pred_region
        _
      $region20: #{conv_module_forward.1} parent=11 // pred_fallthru
        _
      // Predicated region
      $region21: #{conv_module_forward.1} parent=11 // pred_check
        %p212 = pneg %p102
      $region22: #{conv_module_forward.1} parent=11 // pred_check_branch
        %214 = sbr.rel (%p212) target = $region24
      $region23: #{conv_module_forward.1} parent=11 // pred_region
        _
      $region24: #{conv_module_forward.1} parent=11 // pred_fallthru
        _
      // Predicated region
      $region25: #{conv_module_forward.1} parent=11 // pred_check
        %p215 = pneg %p123
      $region26: #{conv_module_forward.1} parent=11 // pred_check_branch
        %217 = sbr.rel (%p215) target = $region28
      $region27: #{conv_module_forward.1} parent=11 // pred_region
        _
      $region28: #{conv_module_forward.1} parent=11 // pred_fallthru
        _
      // Predicated region
      $region29: #{conv_module_forward.1} parent=11 // pred_check
        %p218 = pneg %p144
      $region30: #{conv_module_forward.1} parent=11 // pred_check_branch
        %220 = sbr.rel (%p218) target = $region32
      $region31: #{conv_module_forward.1} parent=11 // pred_region
        _
      $region32: #{conv_module_forward.1} parent=11 // pred_fallthru
        _
      // Predicated region
      $region33: #{conv_module_forward.1} parent=11 // pred_check
        %p221 = pneg %p165
      $region34: #{conv_module_forward.1} parent=11 // pred_check_branch
        %223 = sbr.rel (%p221) target = $region36
      $region35: #{conv_module_forward.1} parent=11 // pred_region
        _
      $region36: #{conv_module_forward.1} parent=11 // pred_fallthru
        _
    $region12: #{conv_module_forward.1} parent=5 // pred_fallthru
      _
    %p224 = scmp.lt.s32.totalorder %s13, 2
    // Predicated region
    $region37: #{conv_module_forward.1} parent=5 // pred_check
      %p225 = pneg %p224
    $region38: #{conv_module_forward.1} parent=5 // pred_check_branch
      %227 = sbr.rel (%p225) target = $region40
    $region39: #{conv_module_forward.1} parent=5 // pred_region
      // Predicated region
      $region41: #{conv_module_forward.1} parent=39 // pred_check
        %p228 = pneg %p33
      $region42: #{conv_module_forward.1} parent=39 // pred_check_branch
        %230 = sbr.rel (%p228) target = $region44
      $region43: #{conv_module_forward.1} parent=39 // pred_region
        %p231 = scmp.lt.s32.totalorder %s13, 1
        %s232 = scalar_select %p231, %s13, 1
        %s233 = smul.addr %s232, 4
        %s234 = smul.addr %s233, 4
        %s235 = scalar_lea.vmem %s0, %s234
      $region44: #{conv_module_forward.1} parent=39 // pred_fallthru
        _
    $region40: #{conv_module_forward.1} parent=5 // pred_fallthru
      _
    %p236 = scmp.le.s32.totalorder 1, %s13
    %p237 = scmp.lt.s32.totalorder %s13, 3
    %p238 = pnand %p236, %p237
    %p239 = pneg %p238
    // Predicated region
    $region45: #{conv_module_forward.1} parent=5 // pred_check
      _
    $region46: #{conv_module_forward.1} parent=5 // pred_check_branch
      %241 = sbr.rel (%p238) target = $region48
    $region47: #{conv_module_forward.1} parent=5 // pred_region
      %s242 = ssub.s32 %s13, 1
      %p243 = scmp.lt.s32.totalorder %s18, 1
      %s244 = scalar_select %p243, %s18, 1
      %s245 = smul.addr %s244, 4
      %s246 = smul.addr %s245, 4
      %s247 = scalar_lea.vmem %s0, %s246
      %p248 = pneg %p39
      %p249 = pneg %p36
      %p250 = pneg %p60
      %p251 = pneg %p57
      %p252 = pneg %p81
      %p253 = pneg %p78
      %p254 = pneg %p102
      %p255 = pneg %p99
      %p256 = pneg %p123
      %p257 = pneg %p120
      %p258 = pneg %p144
      %p259 = pneg %p141
      %p260 = pneg %p165
      %p261 = pneg %p162
      %p262 = pneg %p191
      %p263 = pneg %p188
      %p264 = scmp.lt.s32.totalorder %s18, 1
      %s265 = scalar_select %p264, %s18, 1
      %s266 = smul.addr %s265, 3
      %s267 = smul.addr %s266, 8
      %s268 = scalar_lea.vmem %s7, %s267
      %p269 = scmp.lt.s32.totalorder %s18, 1
      %s270 = scalar_select %p269, %s18, 1
      %s271 = smul.addr %s270, 4
      %s272 = smul.addr %s271, 4
      %s273 = scalar_lea.vmem %s0, %s272
      %p274 = scmp.lt.s32.totalorder %s18, 1
      %s275 = scalar_select %p274, %s18, 1
      %s276 = smul.addr %s275, 3
      %s277 = smul.addr %s276, 8
      %s278 = scalar_lea.vmem %s7, %s277
      %v279 = vld [vmem:[%s273] sm:$0xff]
      %v280 = vld [vmem:[%s273 + $0x8] sm:$0xff]
      %v281 = vld [vmem:[%s1] sm:$0xff]
      %s282 = scalar_lea.vmem %s1, 8
      %v283 = vld [vmem:[%s282] sm:$0xff]
      %v286 = vcombine.high %v279, %v279
      %v287 = vcombine.high %v280, %v280
      %288 = vrot.lane.b32.xlu0 %v279, 127
      %v289 = vpop.permute.xlu0 %288
      %290 = vrot.lane.b32.xlu0 %v286, 127
      %v291 = vpop.permute.xlu0 %290
      %292 = vrot.lane.b32.xlu0 %v280, 127
      %v293 = vpop.permute.xlu0 %292
      %294 = vrot.lane.b32.xlu0 %v287, 127
      %v295 = vpop.permute.xlu0 %294
      %vm296 = vcmask 1039360
      %v297 = vsel %vm296, %v289, %v291
      %v298 = vsel %vm296, %v291, %v293
      %v299 = vsel %vm296, %v293, %v295
      %vm300 = vcmask 31744
      %v302 = vsel %vm300, %v283, 0
      %vm304 = vcmask 1043456
      %v305 = vsel %vm304, %v297, 0
      %v307 = vsel %vm304, %v298, 0
      %v309 = vsel %vm304, %v299, 0
      %311 = vmatprep.subr.mxu0 %v307
      %312 = vmatpush1.msra.mxu0 %v305
      %313 = vmatprep.subr.mxu0 0.0
      %314 = vmatpush1.msra.mxu0 0.0
      %315 = vmatprep.subr.mxu0 0.0
      %316 = vmatpush1.msra.mxu0 0.0
      %317 = vmatprep.subr.mxu0 0.0
      %318 = vmatpush1.msra.mxu0 0.0
      %319 = vmatprep.subr.mxu0 0.0
      %320 = vmatpush1.msra.mxu0 0.0
      %321 = vmatprep.subr.mxu0 0.0
      %322 = vmatpush1.msra.mxu0 0.0
      %323 = vmatprep.subr.mxu0 0.0
      %324 = vmatpush1.msra.mxu0 0.0
      %325 = vmatprep.subr.mxu0 0.0
      %326 = vmatpush1.msra.mxu0 0.0
      %327 = vmatprep.subr.mxu0 0.0
      %328 = vmatpush1.msra.mxu0 0.0
      %329 = vmatprep.subr.mxu0 0.0
      %330 = vmatpush1.msra.mxu0 0.0
      %331 = vmatprep.subr.mxu0 0.0
      %332 = vmatpush1.msra.mxu0 0.0
      %333 = vmatprep.subr.mxu0 0.0
      %334 = vmatpush1.msra.mxu0 0.0
      %335 = vmatprep.subr.mxu0 0.0
      %336 = vmatpush1.msra.mxu0 0.0
      %337 = vmatprep.subr.mxu0 0.0
      %338 = vmatpush1.msra.mxu0 0.0
      %339 = vmatprep.subr.mxu0 0.0
      %340 = vmatpush1.msra.mxu0 0.0
      %341 = vmatprep.subr.mxu0 0.0
      %342 = vmatpush1.msra.mxu0 0.0
      %343 = vmatprep.subr.mxu0 0.0
      %344 = vmatpush1.msra.mxu0 0.0
      %345 = vmatprep.subr.mxu0 0.0
      %346 = vmatpush1.msra.mxu0 0.0
      %347 = vmatprep.subr.mxu0 0.0
      %348 = vmatpush1.msra.mxu0 0.0
      %349 = vmatprep.subr.mxu0 0.0
      %350 = vmatpush1.msra.mxu0 0.0
      %351 = vmatprep.subr.mxu0 0.0
      %352 = vmatpush1.msra.mxu0 0.0
      %353 = vmatprep.subr.mxu0 0.0
      %354 = vmatpush1.msra.mxu0 0.0
      %355 = vmatprep.subr.mxu0 0.0
      %356 = vmatpush1.msra.mxu0 0.0
      %357 = vmatprep.subr.mxu0 0.0
      %358 = vmatpush1.msra.mxu0 0.0
      %359 = vmatprep.subr.mxu0 0.0
      %360 = vmatpush1.msra.mxu0 0.0
      %361 = vmatprep.subr.mxu0 0.0
      %362 = vmatpush1.msra.mxu0 0.0
      %363 = vmatprep.subr.mxu0 0.0
      %364 = vmatpush1.msra.mxu0 0.0
      %365 = vmatprep.subr.mxu0 0.0
      %366 = vmatpush1.msra.mxu0 0.0
      %367 = vmatprep.subr.mxu0 0.0
      %368 = vmatpush1.msra.mxu0 0.0
      %369 = vmatprep.subr.mxu0 0.0
      %370 = vmatpush1.msra.mxu0 0.0
      %371 = vmatprep.subr.mxu0 0.0
      %372 = vmatpush1.msra.mxu0 0.0
      %373 = vmatprep.subr.mxu0 0.0
      %374 = vmatpush1.msra.mxu0 0.0
      %375 = vmatprep.mubr.f32.mxu0 0.0
      %376 = vmatmul.mubr.f32.gmra.mrb[0].mxu0 %v302
      %v377 = vpop.f32.mrb[0].mxu0
      %v378 = vadd.f32 0.0, %v377
      %v379 = vpop.f32.mrb[0].mxu0
      %v380 = vadd.f32 0.0, %v379
      %381 = vdwg.mxu0
      %382 = vmatprep.subr.mxu0 0.0
      %383 = vmatpush1.msra.mxu0 %v309
      %384 = vmatprep.subr.mxu0 0.0
      %385 = vmatpush1.msra.mxu0 0.0
      %386 = vmatprep.subr.mxu0 0.0
      %387 = vmatpush1.msra.mxu0 0.0
      %388 = vmatprep.subr.mxu0 0.0
      %389 = vmatpush1.msra.mxu0 0.0
      %390 = vmatprep.subr.mxu0 0.0
      %391 = vmatpush1.msra.mxu0 0.0
      %392 = vmatprep.subr.mxu0 0.0
      %393 = vmatpush1.msra.mxu0 0.0
      %394 = vmatprep.subr.mxu0 0.0
      %395 = vmatpush1.msra.mxu0 0.0
      %396 = vmatprep.subr.mxu0 0.0
      %397 = vmatpush1.msra.mxu0 0.0
      %398 = vmatprep.subr.mxu0 0.0
      %399 = vmatpush1.msra.mxu0 0.0
      %400 = vmatprep.subr.mxu0 0.0
      %401 = vmatpush1.msra.mxu0 0.0
      %402 = vmatprep.subr.mxu0 0.0
      %403 = vmatpush1.msra.mxu0 0.0
      %404 = vmatprep.subr.mxu0 0.0
      %405 = vmatpush1.msra.mxu0 0.0
      %406 = vmatprep.subr.mxu0 0.0
      %407 = vmatpush1.msra.mxu0 0.0
      %408 = vmatprep.subr.mxu0 0.0
      %409 = vmatpush1.msra.mxu0 0.0
      %410 = vmatprep.subr.mxu0 0.0
      %411 = vmatpush1.msra.mxu0 0.0
      %412 = vmatprep.subr.mxu0 0.0
      %413 = vmatpush1.msra.mxu0 0.0
      %414 = vmatprep.subr.mxu0 0.0
      %415 = vmatpush1.msra.mxu0 0.0
      %416 = vmatprep.subr.mxu0 0.0
      %417 = vmatpush1.msra.mxu0 0.0
      %418 = vmatprep.subr.mxu0 0.0
      %419 = vmatpush1.msra.mxu0 0.0
      %420 = vmatprep.subr.mxu0 0.0
      %421 = vmatpush1.msra.mxu0 0.0
      %422 = vmatprep.subr.mxu0 0.0
      %423 = vmatpush1.msra.mxu0 0.0
      %424 = vmatprep.subr.mxu0 0.0
      %425 = vmatpush1.msra.mxu0 0.0
      %426 = vmatprep.subr.mxu0 0.0
      %427 = vmatpush1.msra.mxu0 0.0
      %428 = vmatprep.subr.mxu0 0.0
      %429 = vmatpush1.msra.mxu0 0.0
      %430 = vmatprep.subr.mxu0 0.0
      %431 = vmatpush1.msra.mxu0 0.0
      %432 = vmatprep.subr.mxu0 0.0
      %433 = vmatpush1.msra.mxu0 0.0
      %434 = vmatprep.subr.mxu0 0.0
      %435 = vmatpush1.msra.mxu0 0.0
      %436 = vmatprep.subr.mxu0 0.0
      %437 = vmatpush1.msra.mxu0 0.0
      %438 = vmatprep.subr.mxu0 0.0
      %439 = vmatpush1.msra.mxu0 0.0
      %440 = vmatprep.subr.mxu0 0.0
      %441 = vmatpush1.msra.mxu0 0.0
      %442 = vmatprep.subr.mxu0 0.0
      %443 = vmatpush1.msra.mxu0 0.0
      %444 = vmatprep.subr.mxu0 0.0
      %445 = vmatpush1.msra.mxu0 0.0
      %446 = vmatprep.mubr.f32.mxu0 0.0
      %447 = vmatmul.mubr.f32.gmra.mrb[0].mxu0 %v302
      %v448 = vpop.f32.mrb[0].mxu0
      %v449 = vadd.f32 0.0, %v448
      %v450 = vpop.f32.mrb[0].mxu0
      %451 = vdwg.mxu0
      %v453 = vsel %vm300, %v281, 0
      %v455 = vsel %vm304, %v279, 0
      %v457 = vsel %vm304, %v286, 0
      %v459 = vsel %vm304, %v280, 0
      %461 = vmatprep.subr.mxu0 %v457
      %462 = vmatpush1.msra.mxu0 %v455
      %463 = vmatprep.subr.mxu0 0.0
      %464 = vmatpush1.msra.mxu0 0.0
      %465 = vmatprep.subr.mxu0 0.0
      %466 = vmatpush1.msra.mxu0 0.0
      %467 = vmatprep.subr.mxu0 0.0
      %468 = vmatpush1.msra.mxu0 0.0
      %469 = vmatprep.subr.mxu0 0.0
      %470 = vmatpush1.msra.mxu0 0.0
      %471 = vmatprep.subr.mxu0 0.0
      %472 = vmatpush1.msra.mxu0 0.0
      %473 = vmatprep.subr.mxu0 0.0
      %474 = vmatpush1.msra.mxu0 0.0
      %475 = vmatprep.subr.mxu0 0.0
      %476 = vmatpush1.msra.mxu0 0.0
      %477 = vmatprep.subr.mxu0 0.0
      %478 = vmatpush1.msra.mxu0 0.0
      %479 = vmatprep.subr.mxu0 0.0
      %480 = vmatpush1.msra.mxu0 0.0
      %481 = vmatprep.subr.mxu0 0.0
      %482 = vmatpush1.msra.mxu0 0.0
      %483 = vmatprep.subr.mxu0 0.0
      %484 = vmatpush1.msra.mxu0 0.0
      %485 = vmatprep.subr.mxu0 0.0
      %486 = vmatpush1.msra.mxu0 0.0
      %487 = vmatprep.subr.mxu0 0.0
      %488 = vmatpush1.msra.mxu0 0.0
      %489 = vmatprep.subr.mxu0 0.0
      %490 = vmatpush1.msra.mxu0 0.0
      %491 = vmatprep.subr.mxu0 0.0
      %492 = vmatpush1.msra.mxu0 0.0
      %493 = vmatprep.subr.mxu0 0.0
      %494 = vmatpush1.msra.mxu0 0.0
      %495 = vmatprep.subr.mxu0 0.0
      %496 = vmatpush1.msra.mxu0 0.0
      %497 = vmatprep.subr.mxu0 0.0
      %498 = vmatpush1.msra.mxu0 0.0
      %499 = vmatprep.subr.mxu0 0.0
      %500 = vmatpush1.msra.mxu0 0.0
      %501 = vmatprep.subr.mxu0 0.0
      %502 = vmatpush1.msra.mxu0 0.0
      %503 = vmatprep.subr.mxu0 0.0
      %504 = vmatpush1.msra.mxu0 0.0
      %505 = vmatprep.subr.mxu0 0.0
      %506 = vmatpush1.msra.mxu0 0.0
      %507 = vmatprep.subr.mxu0 0.0
      %508 = vmatpush1.msra.mxu0 0.0
      %509 = vmatprep.subr.mxu0 0.0
      %510 = vmatpush1.msra.mxu0 0.0
      %511 = vmatprep.subr.mxu0 0.0
      %512 = vmatpush1.msra.mxu0 0.0
      %513 = vmatprep.subr.mxu0 0.0
      %514 = vmatpush1.msra.mxu0 0.0
      %515 = vmatprep.subr.mxu0 0.0
      %516 = vmatpush1.msra.mxu0 0.0
      %517 = vmatprep.subr.mxu0 0.0
      %518 = vmatpush1.msra.mxu0 0.0
      %519 = vmatprep.subr.mxu0 0.0
      %520 = vmatpush1.msra.mxu0 0.0
      %521 = vmatprep.subr.mxu0 0.0
      %522 = vmatpush1.msra.mxu0 0.0
      %523 = vmatprep.subr.mxu0 0.0
      %524 = vmatpush1.msra.mxu0 0.0
      %525 = vmatprep.mubr.f32.mxu0 0.0
      %526 = vmatmul.mubr.f32.gmra.mrb[0].mxu0 %v453
      %v527 = vpop.f32.mrb[0].mxu0
      %v528 = vadd.f32 %v378, %v527
      %v529 = vpop.f32.mrb[0].mxu0
      %v530 = vadd.f32 %v380, %v529
      %531 = vdwg.mxu0
      %532 = vmatprep.subr.mxu0 0.0
      %533 = vmatpush1.msra.mxu0 %v459
      %534 = vmatprep.subr.mxu0 0.0
      %535 = vmatpush1.msra.mxu0 0.0
      %536 = vmatprep.subr.mxu0 0.0
      %537 = vmatpush1.msra.mxu0 0.0
      %538 = vmatprep.subr.mxu0 0.0
      %539 = vmatpush1.msra.mxu0 0.0
      %540 = vmatprep.subr.mxu0 0.0
      %541 = vmatpush1.msra.mxu0 0.0
      %542 = vmatprep.subr.mxu0 0.0
      %543 = vmatpush1.msra.mxu0 0.0
      %544 = vmatprep.subr.mxu0 0.0
      %545 = vmatpush1.msra.mxu0 0.0
      %546 = vmatprep.subr.mxu0 0.0
      %547 = vmatpush1.msra.mxu0 0.0
      %548 = vmatprep.subr.mxu0 0.0
      %549 = vmatpush1.msra.mxu0 0.0
      %550 = vmatprep.subr.mxu0 0.0
      %551 = vmatpush1.msra.mxu0 0.0
      %552 = vmatprep.subr.mxu0 0.0
      %553 = vmatpush1.msra.mxu0 0.0
      %554 = vmatprep.subr.mxu0 0.0
      %555 = vmatpush1.msra.mxu0 0.0
      %556 = vmatprep.subr.mxu0 0.0
      %557 = vmatpush1.msra.mxu0 0.0
      %558 = vmatprep.subr.mxu0 0.0
      %559 = vmatpush1.msra.mxu0 0.0
      %560 = vmatprep.subr.mxu0 0.0
      %561 = vmatpush1.msra.mxu0 0.0
      %562 = vmatprep.subr.mxu0 0.0
      %563 = vmatpush1.msra.mxu0 0.0
      %564 = vmatprep.subr.mxu0 0.0
      %565 = vmatpush1.msra.mxu0 0.0
      %566 = vmatprep.subr.mxu0 0.0
      %567 = vmatpush1.msra.mxu0 0.0
      %568 = vmatprep.subr.mxu0 0.0
      %569 = vmatpush1.msra.mxu0 0.0
      %570 = vmatprep.subr.mxu0 0.0
      %571 = vmatpush1.msra.mxu0 0.0
      %572 = vmatprep.subr.mxu0 0.0
      %573 = vmatpush1.msra.mxu0 0.0
      %574 = vmatprep.subr.mxu0 0.0
      %575 = vmatpush1.msra.mxu0 0.0
      %576 = vmatprep.subr.mxu0 0.0
      %577 = vmatpush1.msra.mxu0 0.0
      %578 = vmatprep.subr.mxu0 0.0
      %579 = vmatpush1.msra.mxu0 0.0
      %580 = vmatprep.subr.mxu0 0.0
      %581 = vmatpush1.msra.mxu0 0.0
      %582 = vmatprep.subr.mxu0 0.0
      %583 = vmatpush1.msra.mxu0 0.0
      %584 = vmatprep.subr.mxu0 0.0
      %585 = vmatpush1.msra.mxu0 0.0
      %586 = vmatprep.subr.mxu0 0.0
      %587 = vmatpush1.msra.mxu0 0.0
      %588 = vmatprep.subr.mxu0 0.0
      %589 = vmatpush1.msra.mxu0 0.0
      %590 = vmatprep.subr.mxu0 0.0
      %591 = vmatpush1.msra.mxu0 0.0
      %592 = vmatprep.subr.mxu0 0.0
      %593 = vmatpush1.msra.mxu0 0.0
      %594 = vmatprep.subr.mxu0 0.0
      %595 = vmatpush1.msra.mxu0 0.0
      %596 = vmatprep.mubr.f32.mxu0 0.0
      %597 = vmatmul.mubr.f32.gmra.mrb[0].mxu0 %v453
      %v598 = vpop.f32.mrb[0].mxu0
      %v599 = vadd.f32 %v449, %v598
      %v600 = vpop.f32.mrb[0].mxu0
      %601 = vdwg.mxu0
      %s602 = scalar_lea.vmem %s1, 16
      %v603 = vld [vmem:[%s602] sm:$0xff]
      %604 = vrot.lane.b32.xlu0 %v279, 126
      %v605 = vpop.permute.xlu0 %604
      %606 = vrot.lane.b32.xlu0 %v286, 126
      %v607 = vpop.permute.xlu0 %606
      %608 = vrot.lane.b32.xlu0 %v280, 126
      %v609 = vpop.permute.xlu0 %608
      %610 = vrot.lane.b32.xlu0 %v287, 126
      %v611 = vpop.permute.xlu0 %610
      %vm612 = vcmask 1031168
      %v613 = vsel %vm612, %v605, %v607
      %v614 = vsel %vm612, %v607, %v609
      %v615 = vsel %vm612, %v609, %v611
      %v617 = vsel %vm300, %v603, 0
      %v619 = vsel %vm304, %v613, 0
      %v621 = vsel %vm304, %v614, 0
      %v623 = vsel %vm304, %v615, 0
      %625 = vmatprep.subr.mxu0 %v621
      %626 = vmatpush1.msra.mxu0 %v619
      %627 = vmatprep.subr.mxu0 0.0
      %628 = vmatpush1.msra.mxu0 0.0
      %629 = vmatprep.subr.mxu0 0.0
      %630 = vmatpush1.msra.mxu0 0.0
      %631 = vmatprep.subr.mxu0 0.0
      %632 = vmatpush1.msra.mxu0 0.0
      %633 = vmatprep.subr.mxu0 0.0
      %634 = vmatpush1.msra.mxu0 0.0
      %635 = vmatprep.subr.mxu0 0.0
      %636 = vmatpush1.msra.mxu0 0.0
      %637 = vmatprep.subr.mxu0 0.0
      %638 = vmatpush1.msra.mxu0 0.0
      %639 = vmatprep.subr.mxu0 0.0
      %640 = vmatpush1.msra.mxu0 0.0
      %641 = vmatprep.subr.mxu0 0.0
      %642 = vmatpush1.msra.mxu0 0.0
      %643 = vmatprep.subr.mxu0 0.0
      %644 = vmatpush1.msra.mxu0 0.0
      %645 = vmatprep.subr.mxu0 0.0
      %646 = vmatpush1.msra.mxu0 0.0
      %647 = vmatprep.subr.mxu0 0.0
      %648 = vmatpush1.msra.mxu0 0.0
      %649 = vmatprep.subr.mxu0 0.0
      %650 = vmatpush1.msra.mxu0 0.0
      %651 = vmatprep.subr.mxu0 0.0
      %652 = vmatpush1.msra.mxu0 0.0
      %653 = vmatprep.subr.mxu0 0.0
      %654 = vmatpush1.msra.mxu0 0.0
      %655 = vmatprep.subr.mxu0 0.0
      %656 = vmatpush1.msra.mxu0 0.0
      %657 = vmatprep.subr.mxu0 0.0
      %658 = vmatpush1.msra.mxu0 0.0
      %659 = vmatprep.subr.mxu0 0.0
      %660 = vmatpush1.msra.mxu0 0.0
      %661 = vmatprep.subr.mxu0 0.0
      %662 = vmatpush1.msra.mxu0 0.0
      %663 = vmatprep.subr.mxu0 0.0
      %664 = vmatpush1.msra.mxu0 0.0
      %665 = vmatprep.subr.mxu0 0.0
      %666 = vmatpush1.msra.mxu0 0.0
      %667 = vmatprep.subr.mxu0 0.0
      %668 = vmatpush1.msra.mxu0 0.0
      %669 = vmatprep.subr.mxu0 0.0
      %670 = vmatpush1.msra.mxu0 0.0
      %671 = vmatprep.subr.mxu0 0.0
      %672 = vmatpush1.msra.mxu0 0.0
      %673 = vmatprep.subr.mxu0 0.0
      %674 = vmatpush1.msra.mxu0 0.0
      %675 = vmatprep.subr.mxu0 0.0
      %676 = vmatpush1.msra.mxu0 0.0
      %677 = vmatprep.subr.mxu0 0.0
      %678 = vmatpush1.msra.mxu0 0.0
      %679 = vmatprep.subr.mxu0 0.0
      %680 = vmatpush1.msra.mxu0 0.0
      %681 = vmatprep.subr.mxu0 0.0
      %682 = vmatpush1.msra.mxu0 0.0
      %683 = vmatprep.subr.mxu0 0.0
      %684 = vmatpush1.msra.mxu0 0.0
      %685 = vmatprep.subr.mxu0 0.0
      %686 = vmatpush1.msra.mxu0 0.0
      %687 = vmatprep.subr.mxu0 0.0
      %688 = vmatpush1.msra.mxu0 0.0
      %689 = vmatprep.mubr.f32.mxu0 0.0
      %690 = vmatmul.mubr.f32.gmra.mrb[0].mxu0 %v617
      %v691 = vpop.f32.mrb[0].mxu0
      %v692 = vadd.f32 0.0, %v691
      %v693 = vpop.f32.mrb[0].mxu0
      %v694 = vadd.f32 0.0, %v693
      %695 = vdwg.mxu0
      %696 = vmatprep.subr.mxu0 0.0
      %697 = vmatpush1.msra.mxu0 %v623
      %698 = vmatprep.subr.mxu0 0.0
      %699 = vmatpush1.msra.mxu0 0.0
      %700 = vmatprep.subr.mxu0 0.0
      %701 = vmatpush1.msra.mxu0 0.0
      %702 = vmatprep.subr.mxu0 0.0
      %703 = vmatpush1.msra.mxu0 0.0
      %704 = vmatprep.subr.mxu0 0.0
      %705 = vmatpush1.msra.mxu0 0.0
      %706 = vmatprep.subr.mxu0 0.0
      %707 = vmatpush1.msra.mxu0 0.0
      %708 = vmatprep.subr.mxu0 0.0
      %709 = vmatpush1.msra.mxu0 0.0
      %710 = vmatprep.subr.mxu0 0.0
      %711 = vmatpush1.msra.mxu0 0.0
      %712 = vmatprep.subr.mxu0 0.0
      %713 = vmatpush1.msra.mxu0 0.0
      %714 = vmatprep.subr.mxu0 0.0
      %715 = vmatpush1.msra.mxu0 0.0
      %716 = vmatprep.subr.mxu0 0.0
      %717 = vmatpush1.msra.mxu0 0.0
      %718 = vmatprep.subr.mxu0 0.0
      %719 = vmatpush1.msra.mxu0 0.0
      %720 = vmatprep.subr.mxu0 0.0
      %721 = vmatpush1.msra.mxu0 0.0
      %722 = vmatprep.subr.mxu0 0.0
      %723 = vmatpush1.msra.mxu0 0.0
      %724 = vmatprep.subr.mxu0 0.0
      %725 = vmatpush1.msra.mxu0 0.0
      %726 = vmatprep.subr.mxu0 0.0
      %727 = vmatpush1.msra.mxu0 0.0
      %728 = vmatprep.subr.mxu0 0.0
      %729 = vmatpush1.msra.mxu0 0.0
      %730 = vmatprep.subr.mxu0 0.0
      %731 = vmatpush1.msra.mxu0 0.0
      %732 = vmatprep.subr.mxu0 0.0
      %733 = vmatpush1.msra.mxu0 0.0
      %734 = vmatprep.subr.mxu0 0.0
      %735 = vmatpush1.msra.mxu0 0.0
      %736 = vmatprep.subr.mxu0 0.0
      %737 = vmatpush1.msra.mxu0 0.0
      %738 = vmatprep.subr.mxu0 0.0
      %739 = vmatpush1.msra.mxu0 0.0
      %740 = vmatprep.subr.mxu0 0.0
      %741 = vmatpush1.msra.mxu0 0.0
      %742 = vmatprep.subr.mxu0 0.0
      %743 = vmatpush1.msra.mxu0 0.0
      %744 = vmatprep.subr.mxu0 0.0
      %745 = vmatpush1.msra.mxu0 0.0
      %746 = vmatprep.subr.mxu0 0.0
      %747 = vmatpush1.msra.mxu0 0.0
      %748 = vmatprep.subr.mxu0 0.0
      %749 = vmatpush1.msra.mxu0 0.0
      %750 = vmatprep.subr.mxu0 0.0
      %751 = vmatpush1.msra.mxu0 0.0
      %752 = vmatprep.subr.mxu0 0.0
      %753 = vmatpush1.msra.mxu0 0.0
      %754 = vmatprep.subr.mxu0 0.0
      %755 = vmatpush1.msra.mxu0 0.0
      %756 = vmatprep.subr.mxu0 0.0
      %757 = vmatpush1.msra.mxu0 0.0
      %758 = vmatprep.subr.mxu0 0.0
      %759 = vmatpush1.msra.mxu0 0.0
      %760 = vmatprep.mubr.f32.mxu0 0.0
      %761 = vmatmul.mubr.f32.gmra.mrb[0].mxu0 %v617
      %v762 = vpop.f32.mrb[0].mxu0
      %v763 = vadd.f32 0.0, %v762
      %v764 = vpop.f32.mrb[0].mxu0
      %765 = vdwg.mxu0
      %v766 = vadd.f32 %v528, %v692
      %v767 = vadd.f32 %v530, %v694
      %v768 = vadd.f32 %v599, %v763
      %s769 = scalar_lea.vmem %s1, 24
      %v770 = vld [vmem:[%s769] sm:$0xff]
      %771 = vrot.lane.b32.xlu0 %v279, 110
      %v772 = vpop.permute.xlu0 %771
      %773 = vrot.lane.b32.xlu0 %v286, 110
      %v774 = vpop.permute.xlu0 %773
      %775 = vrot.lane.b32.xlu0 %v280, 110
      %v776 = vpop.permute.xlu0 %775
      %777 = vrot.lane.b32.xlu0 %v287, 110
      %v778 = vpop.permute.xlu0 %777
      %vm779 = vcmask 900096
      %v780 = vsel %vm779, %v772, %v774
      %v781 = vsel %vm779, %v774, %v776
      %v782 = vsel %vm779, %v776, %v778
      %v784 = vsel %vm300, %v770, 0
      %v786 = vsel %vm304, %v780, 0
      %v788 = vsel %vm304, %v781, 0
      %v790 = vsel %vm304, %v782, 0
      %792 = vmatprep.subr.mxu0 %v788
      %793 = vmatpush1.msra.mxu0 %v786
      %794 = vmatprep.subr.mxu0 0.0
      %795 = vmatpush1.msra.mxu0 0.0
      %796 = vmatprep.subr.mxu0 0.0
      %797 = vmatpush1.msra.mxu0 0.0
      %798 = vmatprep.subr.mxu0 0.0
      %799 = vmatpush1.msra.mxu0 0.0
      %800 = vmatprep.subr.mxu0 0.0
      %801 = vmatpush1.msra.mxu0 0.0
      %802 = vmatprep.subr.mxu0 0.0
      %803 = vmatpush1.msra.mxu0 0.0
      %804 = vmatprep.subr.mxu0 0.0
      %805 = vmatpush1.msra.mxu0 0.0
      %806 = vmatprep.subr.mxu0 0.0
      %807 = vmatpush1.msra.mxu0 0.0
      %808 = vmatprep.subr.mxu0 0.0
      %809 = vmatpush1.msra.mxu0 0.0
      %810 = vmatprep.subr.mxu0 0.0
      %811 = vmatpush1.msra.mxu0 0.0
      %812 = vmatprep.subr.mxu0 0.0
      %813 = vmatpush1.msra.mxu0 0.0
      %814 = vmatprep.subr.mxu0 0.0
      %815 = vmatpush1.msra.mxu0 0.0
      %816 = vmatprep.subr.mxu0 0.0
      %817 = vmatpush1.msra.mxu0 0.0
      %818 = vmatprep.subr.mxu0 0.0
      %819 = vmatpush1.msra.mxu0 0.0
      %820 = vmatprep.subr.mxu0 0.0
      %821 = vmatpush1.msra.mxu0 0.0
      %822 = vmatprep.subr.mxu0 0.0
      %823 = vmatpush1.msra.mxu0 0.0
      %824 = vmatprep.subr.mxu0 0.0
      %825 = vmatpush1.msra.mxu0 0.0
      %826 = vmatprep.subr.mxu0 0.0
      %827 = vmatpush1.msra.mxu0 0.0
      %828 = vmatprep.subr.mxu0 0.0
      %829 = vmatpush1.msra.mxu0 0.0
      %830 = vmatprep.subr.mxu0 0.0
      %831 = vmatpush1.msra.mxu0 0.0
      %832 = vmatprep.subr.mxu0 0.0
      %833 = vmatpush1.msra.mxu0 0.0
      %834 = vmatprep.subr.mxu0 0.0
      %835 = vmatpush1.msra.mxu0 0.0
      %836 = vmatprep.subr.mxu0 0.0
      %837 = vmatpush1.msra.mxu0 0.0
      %838 = vmatprep.subr.mxu0 0.0
      %839 = vmatpush1.msra.mxu0 0.0
      %840 = vmatprep.subr.mxu0 0.0
      %841 = vmatpush1.msra.mxu0 0.0
      %842 = vmatprep.subr.mxu0 0.0
      %843 = vmatpush1.msra.mxu0 0.0
      %844 = vmatprep.subr.mxu0 0.0
      %845 = vmatpush1.msra.mxu0 0.0
      %846 = vmatprep.subr.mxu0 0.0
      %847 = vmatpush1.msra.mxu0 0.0
      %848 = vmatprep.subr.mxu0 0.0
      %849 = vmatpush1.msra.mxu0 0.0
      %850 = vmatprep.subr.mxu0 0.0
      %851 = vmatpush1.msra.mxu0 0.0
      %852 = vmatprep.subr.mxu0 0.0
      %853 = vmatpush1.msra.mxu0 0.0
      %854 = vmatprep.subr.mxu0 0.0
      %855 = vmatpush1.msra.mxu0 0.0
      %856 = vmatprep.mubr.f32.mxu0 0.0
      %857 = vmatmul.mubr.f32.gmra.mrb[0].mxu0 %v784
      %v858 = vpop.f32.mrb[0].mxu0
      %v859 = vadd.f32 0.0, %v858
      %v860 = vpop.f32.mrb[0].mxu0
      %v861 = vadd.f32 0.0, %v860
      %862 = vdwg.mxu0
      %863 = vmatprep.subr.mxu0 0.0
      %864 = vmatpush1.msra.mxu0 %v790
      %865 = vmatprep.subr.mxu0 0.0
      %866 = vmatpush1.msra.mxu0 0.0
      %867 = vmatprep.subr.mxu0 0.0
      %868 = vmatpush1.msra.mxu0 0.0
      %869 = vmatprep.subr.mxu0 0.0
      %870 = vmatpush1.msra.mxu0 0.0
      %871 = vmatprep.subr.mxu0 0.0
      %872 = vmatpush1.msra.mxu0 0.0
      %873 = vmatprep.subr.mxu0 0.0
      %874 = vmatpush1.msra.mxu0 0.0
      %875 = vmatprep.subr.mxu0 0.0
      %876 = vmatpush1.msra.mxu0 0.0
      %877 = vmatprep.subr.mxu0 0.0
      %878 = vmatpush1.msra.mxu0 0.0
      %879 = vmatprep.subr.mxu0 0.0
      %880 = vmatpush1.msra.mxu0 0.0
      %881 = vmatprep.subr.mxu0 0.0
      %882 = vmatpush1.msra.mxu0 0.0
      %883 = vmatprep.subr.mxu0 0.0
      %884 = vmatpush1.msra.mxu0 0.0
      %885 = vmatprep.subr.mxu0 0.0
      %886 = vmatpush1.msra.mxu0 0.0
      %887 = vmatprep.subr.mxu0 0.0
      %888 = vmatpush1.msra.mxu0 0.0
      %889 = vmatprep.subr.mxu0 0.0
      %890 = vmatpush1.msra.mxu0 0.0
      %891 = vmatprep.subr.mxu0 0.0
      %892 = vmatpush1.msra.mxu0 0.0
      %893 = vmatprep.subr.mxu0 0.0
      %894 = vmatpush1.msra.mxu0 0.0
      %895 = vmatprep.subr.mxu0 0.0
      %896 = vmatpush1.msra.mxu0 0.0
      %897 = vmatprep.subr.mxu0 0.0
      %898 = vmatpush1.msra.mxu0 0.0
      %899 = vmatprep.subr.mxu0 0.0
      %900 = vmatpush1.msra.mxu0 0.0
      %901 = vmatprep.subr.mxu0 0.0
      %902 = vmatpush1.msra.mxu0 0.0
      %903 = vmatprep.subr.mxu0 0.0
      %904 = vmatpush1.msra.mxu0 0.0
      %905 = vmatprep.subr.mxu0 0.0
      %906 = vmatpush1.msra.mxu0 0.0
      %907 = vmatprep.subr.mxu0 0.0
      %908 = vmatpush1.msra.mxu0 0.0
      %909 = vmatprep.subr.mxu0 0.0
      %910 = vmatpush1.msra.mxu0 0.0
      %911 = vmatprep.subr.mxu0 0.0
      %912 = vmatpush1.msra.mxu0 0.0
      %913 = vmatprep.subr.mxu0 0.0
      %914 = vmatpush1.msra.mxu0 0.0
      %915 = vmatprep.subr.mxu0 0.0
      %916 = vmatpush1.msra.mxu0 0.0
      %917 = vmatprep.subr.mxu0 0.0
      %918 = vmatpush1.msra.mxu0 0.0
      %919 = vmatprep.subr.mxu0 0.0
      %920 = vmatpush1.msra.mxu0 0.0
      %921 = vmatprep.subr.mxu0 0.0
      %922 = vmatpush1.msra.mxu0 0.0
      %923 = vmatprep.subr.mxu0 0.0
      %924 = vmatpush1.msra.mxu0 0.0
      %925 = vmatprep.subr.mxu0 0.0
      %926 = vmatpush1.msra.mxu0 0.0
      %927 = vmatprep.mubr.f32.mxu0 0.0
      %928 = vmatmul.mubr.f32.gmra.mrb[0].mxu0 %v784
      %v929 = vpop.f32.mrb[0].mxu0
      %v930 = vadd.f32 0.0, %v929
      %v931 = vpop.f32.mrb[0].mxu0
      %932 = vdwg.mxu0
      %v933 = vadd.f32 %v766, %v859
      %v934 = vadd.f32 %v767, %v861
      %v935 = vadd.f32 %v768, %v930
      %s936 = scalar_lea.vmem %s1, 32
      %v937 = vld [vmem:[%s936] sm:$0xff]
      %938 = vrot.lane.b32.xlu0 %v279, 109
      %v939 = vpop.permute.xlu0 %938
      %940 = vrot.lane.b32.xlu0 %v286, 109
      %v941 = vpop.permute.xlu0 %940
      %942 = vrot.lane.b32.xlu0 %v280, 109
      %v943 = vpop.permute.xlu0 %942
      %944 = vrot.lane.b32.xlu0 %v287, 109
      %v945 = vpop.permute.xlu0 %944
      %vm946 = vcmask 891904
      %v947 = vsel %vm946, %v939, %v941
      %v948 = vsel %vm946, %v941, %v943
      %v949 = vsel %vm946, %v943, %v945
      %v951 = vsel %vm300, %v937, 0
      %v953 = vsel %vm304, %v947, 0
      %v955 = vsel %vm304, %v948, 0
      %v957 = vsel %vm304, %v949, 0
      %959 = vmatprep.subr.mxu0 %v955
      %960 = vmatpush1.msra.mxu0 %v953
      %961 = vmatprep.subr.mxu0 0.0
      %962 = vmatpush1.msra.mxu0 0.0
      %963 = vmatprep.subr.mxu0 0.0
      %964 = vmatpush1.msra.mxu0 0.0
      %965 = vmatprep.subr.mxu0 0.0
      %966 = vmatpush1.msra.mxu0 0.0
      %967 = vmatprep.subr.mxu0 0.0
      %968 = vmatpush1.msra.mxu0 0.0
      %969 = vmatprep.subr.mxu0 0.0
      %970 = vmatpush1.msra.mxu0 0.0
      %971 = vmatprep.subr.mxu0 0.0
      %972 = vmatpush1.msra.mxu0 0.0
      %973 = vmatprep.subr.mxu0 0.0
      %974 = vmatpush1.msra.mxu0 0.0
      %975 = vmatprep.subr.mxu0 0.0
      %976 = vmatpush1.msra.mxu0 0.0
      %977 = vmatprep.subr.mxu0 0.0
      %978 = vmatpush1.msra.mxu0 0.0
      %979 = vmatprep.subr.mxu0 0.0
      %980 = vmatpush1.msra.mxu0 0.0
      %981 = vmatprep.subr.mxu0 0.0
      %982 = vmatpush1.msra.mxu0 0.0
      %983 = vmatprep.subr.mxu0 0.0
      %984 = vmatpush1.msra.mxu0 0.0
      %985 = vmatprep.subr.mxu0 0.0
      %986 = vmatpush1.msra.mxu0 0.0
      %987 = vmatprep.subr.mxu0 0.0
      %988 = vmatpush1.msra.mxu0 0.0
      %989 = vmatprep.subr.mxu0 0.0
      %990 = vmatpush1.msra.mxu0 0.0
      %991 = vmatprep.subr.mxu0 0.0
      %992 = vmatpush1.msra.mxu0 0.0
      %993 = vmatprep.subr.mxu0 0.0
      %994 = vmatpush1.msra.mxu0 0.0
      %995 = vmatprep.subr.mxu0 0.0
      %996 = vmatpush1.msra.mxu0 0.0
      %997 = vmatprep.subr.mxu0 0.0
      %998 = vmatpush1.msra.mxu0 0.0
      %999 = vmatprep.subr.mxu0 0.0
      %1000 = vmatpush1.msra.mxu0 0.0
      %1001 = vmatprep.subr.mxu0 0.0
      %1002 = vmatpush1.msra.mxu0 0.0
      %1003 = vmatprep.subr.mxu0 0.0
      %1004 = vmatpush1.msra.mxu0 0.0
      %1005 = vmatprep.subr.mxu0 0.0
      %1006 = vmatpush1.msra.mxu0 0.0
      %1007 = vmatprep.subr.mxu0 0.0
      %1008 = vmatpush1.msra.mxu0 0.0
      %1009 = vmatprep.subr.mxu0 0.0
      %1010 = vmatpush1.msra.mxu0 0.0
      %1011 = vmatprep.subr.mxu0 0.0
      %1012 = vmatpush1.msra.mxu0 0.0
      %1013 = vmatprep.subr.mxu0 0.0
      %1014 = vmatpush1.msra.mxu0 0.0
      %1015 = vmatprep.subr.mxu0 0.0
      %1016 = vmatpush1.msra.mxu0 0.0
      %1017 = vmatprep.subr.mxu0 0.0
      %1018 = vmatpush1.msra.mxu0 0.0
      %1019 = vmatprep.subr.mxu0 0.0
      %1020 = vmatpush1.msra.mxu0 0.0
      %1021 = vmatprep.subr.mxu0 0.0
      %1022 = vmatpush1.msra.mxu0 0.0
      %1023 = vmatprep.mubr.f32.mxu0 0.0
      %1024 = vmatmul.mubr.f32.gmra.mrb[0].mxu0 %v951
      %v1025 = vpop.f32.mrb[0].mxu0
      %v1026 = vadd.f32 0.0, %v1025
      %v1027 = vpop.f32.mrb[0].mxu0
      %v1028 = vadd.f32 0.0, %v1027
      %1029 = vdwg.mxu0
      %1030 = vmatprep.subr.mxu0 0.0
      %1031 = vmatpush1.msra.mxu0 %v957
      %1032 = vmatprep.subr.mxu0 0.0
      %1033 = vmatpush1.msra.mxu0 0.0
      %1034 = vmatprep.subr.mxu0 0.0
      %1035 = vmatpush1.msra.mxu0 0.0
      %1036 = vmatprep.subr.mxu0 0.0
      %1037 = vmatpush1.msra.mxu0 0.0
      %1038 = vmatprep.subr.mxu0 0.0
      %1039 = vmatpush1.msra.mxu0 0.0
      %1040 = vmatprep.subr.mxu0 0.0
      %1041 = vmatpush1.msra.mxu0 0.0
      %1042 = vmatprep.subr.mxu0 0.0
      %1043 = vmatpush1.msra.mxu0 0.0
      %1044 = vmatprep.subr.mxu0 0.0
      %1045 = vmatpush1.msra.mxu0 0.0
      %1046 = vmatprep.subr.mxu0 0.0
      %1047 = vmatpush1.msra.mxu0 0.0
      %1048 = vmatprep.subr.mxu0 0.0
      %1049 = vmatpush1.msra.mxu0 0.0
      %1050 = vmatprep.subr.mxu0 0.0
      %1051 = vmatpush1.msra.mxu0 0.0
      %1052 = vmatprep.subr.mxu0 0.0
      %1053 = vmatpush1.msra.mxu0 0.0
      %1054 = vmatprep.subr.mxu0 0.0
      %1055 = vmatpush1.msra.mxu0 0.0
      %1056 = vmatprep.subr.mxu0 0.0
      %1057 = vmatpush1.msra.mxu0 0.0
      %1058 = vmatprep.subr.mxu0 0.0
      %1059 = vmatpush1.msra.mxu0 0.0
      %1060 = vmatprep.subr.mxu0 0.0
      %1061 = vmatpush1.msra.mxu0 0.0
      %1062 = vmatprep.subr.mxu0 0.0
      %1063 = vmatpush1.msra.mxu0 0.0
      %1064 = vmatprep.subr.mxu0 0.0
      %1065 = vmatpush1.msra.mxu0 0.0
      %1066 = vmatprep.subr.mxu0 0.0
      %1067 = vmatpush1.msra.mxu0 0.0
      %1068 = vmatprep.subr.mxu0 0.0
      %1069 = vmatpush1.msra.mxu0 0.0
      %1070 = vmatprep.subr.mxu0 0.0
      %1071 = vmatpush1.msra.mxu0 0.0
      %1072 = vmatprep.subr.mxu0 0.0
      %1073 = vmatpush1.msra.mxu0 0.0
      %1074 = vmatprep.subr.mxu0 0.0
      %1075 = vmatpush1.msra.mxu0 0.0
      %1076 = vmatprep.subr.mxu0 0.0
      %1077 = vmatpush1.msra.mxu0 0.0
      %1078 = vmatprep.subr.mxu0 0.0
      %1079 = vmatpush1.msra.mxu0 0.0
      %1080 = vmatprep.subr.mxu0 0.0
      %1081 = vmatpush1.msra.mxu0 0.0
      %1082 = vmatprep.subr.mxu0 0.0
      %1083 = vmatpush1.msra.mxu0 0.0
      %1084 = vmatprep.subr.mxu0 0.0
      %1085 = vmatpush1.msra.mxu0 0.0
      %1086 = vmatprep.subr.mxu0 0.0
      %1087 = vmatpush1.msra.mxu0 0.0
      %1088 = vmatprep.subr.mxu0 0.0
      %1089 = vmatpush1.msra.mxu0 0.0
      %1090 = vmatprep.subr.mxu0 0.0
      %1091 = vmatpush1.msra.mxu0 0.0
      %1092 = vmatprep.subr.mxu0 0.0
      %1093 = vmatpush1.msra.mxu0 0.0
      %1094 = vmatprep.mubr.f32.mxu0 0.0
      %1095 = vmatmul.mubr.f32.gmra.mrb[0].mxu0 %v951
      %v1096 = vpop.f32.mrb[0].mxu0
      %v1097 = vadd.f32 0.0, %v1096
      %v1098 = vpop.f32.mrb[0].mxu0
      %1099 = vdwg.mxu0
      %v1100 = vadd.f32 %v933, %v1026
      %v1101 = vadd.f32 %v934, %v1028
      %v1102 = vadd.f32 %v935, %v1097
      %s1103 = scalar_lea.vmem %s1, 40
      %v1104 = vld [vmem:[%s1103] sm:$0xff]
      %1105 = vrot.lane.b32.xlu0 %v279, 108
      %v1106 = vpop.permute.xlu0 %1105
      %1107 = vrot.lane.b32.xlu0 %v286, 108
      %v1108 = vpop.permute.xlu0 %1107
      %1109 = vrot.lane.b32.xlu0 %v280, 108
      %v1110 = vpop.permute.xlu0 %1109
      %1111 = vrot.lane.b32.xlu0 %v287, 108
      %v1112 = vpop.permute.xlu0 %1111
      %vm1113 = vcmask 883712
      %v1114 = vsel %vm1113, %v1106, %v1108
      %v1115 = vsel %vm1113, %v1108, %v1110
      %v1116 = vsel %vm1113, %v1110, %v1112
      %v1118 = vsel %vm300, %v1104, 0
      %v1120 = vsel %vm304, %v1114, 0
      %v1122 = vsel %vm304, %v1115, 0
      %v1124 = vsel %vm304, %v1116, 0
      %1126 = vmatprep.subr.mxu0 %v1122
      %1127 = vmatpush1.msra.mxu0 %v1120
      %1128 = vmatprep.subr.mxu0 0.0
      %1129 = vmatpush1.msra.mxu0 0.0
      %1130 = vmatprep.subr.mxu0 0.0
      %1131 = vmatpush1.msra.mxu0 0.0
      %1132 = vmatprep.subr.mxu0 0.0
      %1133 = vmatpush1.msra.mxu0 0.0
      %1134 = vmatprep.subr.mxu0 0.0
      %1135 = vmatpush1.msra.mxu0 0.0
      %1136 = vmatprep.subr.mxu0 0.0
      %1137 = vmatpush1.msra.mxu0 0.0
      %1138 = vmatprep.subr.mxu0 0.0
      %1139 = vmatpush1.msra.mxu0 0.0
      %1140 = vmatprep.subr.mxu0 0.0
      %1141 = vmatpush1.msra.mxu0 0.0
      %1142 = vmatprep.subr.mxu0 0.0
      %1143 = vmatpush1.msra.mxu0 0.0
      %1144 = vmatprep.subr.mxu0 0.0
      %1145 = vmatpush1.msra.mxu0 0.0
      %1146 = vmatprep.subr.mxu0 0.0
      %1147 = vmatpush1.msra.mxu0 0.0
      %1148 = vmatprep.subr.mxu0 0.0
      %1149 = vmatpush1.msra.mxu0 0.0
      %1150 = vmatprep.subr.mxu0 0.0
      %1151 = vmatpush1.msra.mxu0 0.0
      %1152 = vmatprep.subr.mxu0 0.0
      %1153 = vmatpush1.msra.mxu0 0.0
      %1154 = vmatprep.subr.mxu0 0.0
      %1155 = vmatpush1.msra.mxu0 0.0
      %1156 = vmatprep.subr.mxu0 0.0
      %1157 = vmatpush1.msra.mxu0 0.0
      %1158 = vmatprep.subr.mxu0 0.0
      %1159 = vmatpush1.msra.mxu0 0.0
      %1160 = vmatprep.subr.mxu0 0.0
      %1161 = vmatpush1.msra.mxu0 0.0
      %1162 = vmatprep.subr.mxu0 0.0
      %1163 = vmatpush1.msra.mxu0 0.0
      %1164 = vmatprep.subr.mxu0 0.0
      %1165 = vmatpush1.msra.mxu0 0.0
      %1166 = vmatprep.subr.mxu0 0.0
      %1167 = vmatpush1.msra.mxu0 0.0
      %1168 = vmatprep.subr.mxu0 0.0
      %1169 = vmatpush1.msra.mxu0 0.0
      %1170 = vmatprep.subr.mxu0 0.0
      %1171 = vmatpush1.msra.mxu0 0.0
      %1172 = vmatprep.subr.mxu0 0.0
      %1173 = vmatpush1.msra.mxu0 0.0
      %1174 = vmatprep.subr.mxu0 0.0
      %1175 = vmatpush1.msra.mxu0 0.0
      %1176 = vmatprep.subr.mxu0 0.0
      %1177 = vmatpush1.msra.mxu0 0.0
      %1178 = vmatprep.subr.mxu0 0.0
      %1179 = vmatpush1.msra.mxu0 0.0
      %1180 = vmatprep.subr.mxu0 0.0
      %1181 = vmatpush1.msra.mxu0 0.0
      %1182 = vmatprep.subr.mxu0 0.0
      %1183 = vmatpush1.msra.mxu0 0.0
      %1184 = vmatprep.subr.mxu0 0.0
      %1185 = vmatpush1.msra.mxu0 0.0
      %1186 = vmatprep.subr.mxu0 0.0
      %1187 = vmatpush1.msra.mxu0 0.0
      %1188 = vmatprep.subr.mxu0 0.0
      %1189 = vmatpush1.msra.mxu0 0.0
      %1190 = vmatprep.mubr.f32.mxu0 0.0
      %1191 = vmatmul.mubr.f32.gmra.mrb[0].mxu0 %v1118
      %v1192 = vpop.f32.mrb[0].mxu0
      %v1193 = vadd.f32 0.0, %v1192
      %v1194 = vpop.f32.mrb[0].mxu0
      %v1195 = vadd.f32 0.0, %v1194
      %1196 = vdwg.mxu0
      %1197 = vmatprep.subr.mxu0 0.0
      %1198 = vmatpush1.msra.mxu0 %v1124
      %1199 = vmatprep.subr.mxu0 0.0
      %1200 = vmatpush1.msra.mxu0 0.0
      %1201 = vmatprep.subr.mxu0 0.0
      %1202 = vmatpush1.msra.mxu0 0.0
      %1203 = vmatprep.subr.mxu0 0.0
      %1204 = vmatpush1.msra.mxu0 0.0
      %1205 = vmatprep.subr.mxu0 0.0
      %1206 = vmatpush1.msra.mxu0 0.0
      %1207 = vmatprep.subr.mxu0 0.0
      %1208 = vmatpush1.msra.mxu0 0.0
      %1209 = vmatprep.subr.mxu0 0.0
      %1210 = vmatpush1.msra.mxu0 0.0
      %1211 = vmatprep.subr.mxu0 0.0
      %1212 = vmatpush1.msra.mxu0 0.0
      %1213 = vmatprep.subr.mxu0 0.0
      %1214 = vmatpush1.msra.mxu0 0.0
      %1215 = vmatprep.subr.mxu0 0.0
      %1216 = vmatpush1.msra.mxu0 0.0
      %1217 = vmatprep.subr.mxu0 0.0
      %1218 = vmatpush1.msra.mxu0 0.0
      %1219 = vmatprep.subr.mxu0 0.0
      %1220 = vmatpush1.msra.mxu0 0.0
      %1221 = vmatprep.subr.mxu0 0.0
      %1222 = vmatpush1.msra.mxu0 0.0
      %1223 = vmatprep.subr.mxu0 0.0
      %1224 = vmatpush1.msra.mxu0 0.0
      %1225 = vmatprep.subr.mxu0 0.0
      %1226 = vmatpush1.msra.mxu0 0.0
      %1227 = vmatprep.subr.mxu0 0.0
      %1228 = vmatpush1.msra.mxu0 0.0
      %1229 = vmatprep.subr.mxu0 0.0
      %1230 = vmatpush1.msra.mxu0 0.0
      %1231 = vmatprep.subr.mxu0 0.0
      %1232 = vmatpush1.msra.mxu0 0.0
      %1233 = vmatprep.subr.mxu0 0.0
      %1234 = vmatpush1.msra.mxu0 0.0
      %1235 = vmatprep.subr.mxu0 0.0
      %1236 = vmatpush1.msra.mxu0 0.0
      %1237 = vmatprep.subr.mxu0 0.0
      %1238 = vmatpush1.msra.mxu0 0.0
      %1239 = vmatprep.subr.mxu0 0.0
      %1240 = vmatpush1.msra.mxu0 0.0
      %1241 = vmatprep.subr.mxu0 0.0
      %1242 = vmatpush1.msra.mxu0 0.0
      %1243 = vmatprep.subr.mxu0 0.0
      %1244 = vmatpush1.msra.mxu0 0.0
      %1245 = vmatprep.subr.mxu0 0.0
      %1246 = vmatpush1.msra.mxu0 0.0
      %1247 = vmatprep.subr.mxu0 0.0
      %1248 = vmatpush1.msra.mxu0 0.0
      %1249 = vmatprep.subr.mxu0 0.0
      %1250 = vmatpush1.msra.mxu0 0.0
      %1251 = vmatprep.subr.mxu0 0.0
      %1252 = vmatpush1.msra.mxu0 0.0
      %1253 = vmatprep.subr.mxu0 0.0
      %1254 = vmatpush1.msra.mxu0 0.0
      %1255 = vmatprep.subr.mxu0 0.0
      %1256 = vmatpush1.msra.mxu0 0.0
      %1257 = vmatprep.subr.mxu0 0.0
      %1258 = vmatpush1.msra.mxu0 0.0
      %1259 = vmatprep.subr.mxu0 0.0
      %1260 = vmatpush1.msra.mxu0 0.0
      %1261 = vmatprep.mubr.f32.mxu0 0.0
      %1262 = vmatmul.mubr.f32.gmra.mrb[0].mxu0 %v1118
      %v1263 = vpop.f32.mrb[0].mxu0
      %v1264 = vadd.f32 0.0, %v1263
      %v1265 = vpop.f32.mrb[0].mxu0
      %1266 = vdwg.mxu0
      %v1267 = vadd.f32 %v1100, %v1193
      %v1268 = vadd.f32 %v1101, %v1195
      %v1269 = vadd.f32 %v1102, %v1264
      %s1270 = scalar_lea.vmem %s1, 48
      %v1271 = vld [vmem:[%s1270] sm:$0xff]
      %1272 = vrot.lane.b32.xlu0 %v279, 92
      %v1273 = vpop.permute.xlu0 %1272
      %1274 = vrot.lane.b32.xlu0 %v286, 92
      %v1275 = vpop.permute.xlu0 %1274
      %1276 = vrot.lane.b32.xlu0 %v280, 92
      %v1277 = vpop.permute.xlu0 %1276
      %1278 = vrot.lane.b32.xlu0 %v287, 92
      %v1279 = vpop.permute.xlu0 %1278
      %vm1280 = vcmask 752640
      %v1281 = vsel %vm1280, %v1273, %v1275
      %v1282 = vsel %vm1280, %v1275, %v1277
      %v1283 = vsel %vm1280, %v1277, %v1279
      %v1285 = vsel %vm300, %v1271, 0
      %v1287 = vsel %vm304, %v1281, 0
      %v1289 = vsel %vm304, %v1282, 0
      %v1291 = vsel %vm304, %v1283, 0
      %1293 = vmatprep.subr.mxu0 %v1289
      %1294 = vmatpush1.msra.mxu0 %v1287
      %1295 = vmatprep.subr.mxu0 0.0
      %1296 = vmatpush1.msra.mxu0 0.0
      %1297 = vmatprep.subr.mxu0 0.0
      %1298 = vmatpush1.msra.mxu0 0.0
      %1299 = vmatprep.subr.mxu0 0.0
      %1300 = vmatpush1.msra.mxu0 0.0
      %1301 = vmatprep.subr.mxu0 0.0
      %1302 = vmatpush1.msra.mxu0 0.0
      %1303 = vmatprep.subr.mxu0 0.0
      %1304 = vmatpush1.msra.mxu0 0.0
      %1305 = vmatprep.subr.mxu0 0.0
      %1306 = vmatpush1.msra.mxu0 0.0
      %1307 = vmatprep.subr.mxu0 0.0
      %1308 = vmatpush1.msra.mxu0 0.0
      %1309 = vmatprep.subr.mxu0 0.0
      %1310 = vmatpush1.msra.mxu0 0.0
      %1311 = vmatprep.subr.mxu0 0.0
      %1312 = vmatpush1.msra.mxu0 0.0
      %1313 = vmatprep.subr.mxu0 0.0
      %1314 = vmatpush1.msra.mxu0 0.0
      %1315 = vmatprep.subr.mxu0 0.0
      %1316 = vmatpush1.msra.mxu0 0.0
      %1317 = vmatprep.subr.mxu0 0.0
      %1318 = vmatpush1.msra.mxu0 0.0
      %1319 = vmatprep.subr.mxu0 0.0
      %1320 = vmatpush1.msra.mxu0 0.0
      %1321 = vmatprep.subr.mxu0 0.0
      %1322 = vmatpush1.msra.mxu0 0.0
      %1323 = vmatprep.subr.mxu0 0.0
      %1324 = vmatpush1.msra.mxu0 0.0
      %1325 = vmatprep.subr.mxu0 0.0
      %1326 = vmatpush1.msra.mxu0 0.0
      %1327 = vmatprep.subr.mxu0 0.0
      %1328 = vmatpush1.msra.mxu0 0.0
      %1329 = vmatprep.subr.mxu0 0.0
      %1330 = vmatpush1.msra.mxu0 0.0
      %1331 = vmatprep.subr.mxu0 0.0
      %1332 = vmatpush1.msra.mxu0 0.0
      %1333 = vmatprep.subr.mxu0 0.0
      %1334 = vmatpush1.msra.mxu0 0.0
      %1335 = vmatprep.subr.mxu0 0.0
      %1336 = vmatpush1.msra.mxu0 0.0
      %1337 = vmatprep.subr.mxu0 0.0
      %1338 = vmatpush1.msra.mxu0 0.0
      %1339 = vmatprep.subr.mxu0 0.0
      %1340 = vmatpush1.msra.mxu0 0.0
      %1341 = vmatprep.subr.mxu0 0.0
      %1342 = vmatpush1.msra.mxu0 0.0
      %1343 = vmatprep.subr.mxu0 0.0
      %1344 = vmatpush1.msra.mxu0 0.0
      %1345 = vmatprep.subr.mxu0 0.0
      %1346 = vmatpush1.msra.mxu0 0.0
      %1347 = vmatprep.subr.mxu0 0.0
      %1348 = vmatpush1.msra.mxu0 0.0
      %1349 = vmatprep.subr.mxu0 0.0
      %1350 = vmatpush1.msra.mxu0 0.0
      %1351 = vmatprep.subr.mxu0 0.0
      %1352 = vmatpush1.msra.mxu0 0.0
      %1353 = vmatprep.subr.mxu0 0.0
      %1354 = vmatpush1.msra.mxu0 0.0
      %1355 = vmatprep.subr.mxu0 0.0
      %1356 = vmatpush1.msra.mxu0 0.0
      %1357 = vmatprep.mubr.f32.mxu0 0.0
      %1358 = vmatmul.mubr.f32.gmra.mrb[0].mxu0 %v1285
      %v1359 = vpop.f32.mrb[0].mxu0
      %v1360 = vadd.f32 0.0, %v1359
      %v1361 = vpop.f32.mrb[0].mxu0
      %v1362 = vadd.f32 0.0, %v1361
      %1363 = vdwg.mxu0
      %1364 = vmatprep.subr.mxu0 0.0
      %1365 = vmatpush1.msra.mxu0 %v1291
      %1366 = vmatprep.subr.mxu0 0.0
      %1367 = vmatpush1.msra.mxu0 0.0
      %1368 = vmatprep.subr.mxu0 0.0
      %1369 = vmatpush1.msra.mxu0 0.0
      %1370 = vmatprep.subr.mxu0 0.0
      %1371 = vmatpush1.msra.mxu0 0.0
      %1372 = vmatprep.subr.mxu0 0.0
      %1373 = vmatpush1.msra.mxu0 0.0
      %1374 = vmatprep.subr.mxu0 0.0
      %1375 = vmatpush1.msra.mxu0 0.0
      %1376 = vmatprep.subr.mxu0 0.0
      %1377 = vmatpush1.msra.mxu0 0.0
      %1378 = vmatprep.subr.mxu0 0.0
      %1379 = vmatpush1.msra.mxu0 0.0
      %1380 = vmatprep.subr.mxu0 0.0
      %1381 = vmatpush1.msra.mxu0 0.0
      %1382 = vmatprep.subr.mxu0 0.0
      %1383 = vmatpush1.msra.mxu0 0.0
      %1384 = vmatprep.subr.mxu0 0.0
      %1385 = vmatpush1.msra.mxu0 0.0
      %1386 = vmatprep.subr.mxu0 0.0
      %1387 = vmatpush1.msra.mxu0 0.0
      %1388 = vmatprep.subr.mxu0 0.0
      %1389 = vmatpush1.msra.mxu0 0.0
      %1390 = vmatprep.subr.mxu0 0.0
      %1391 = vmatpush1.msra.mxu0 0.0
      %1392 = vmatprep.subr.mxu0 0.0
      %1393 = vmatpush1.msra.mxu0 0.0
      %1394 = vmatprep.subr.mxu0 0.0
      %1395 = vmatpush1.msra.mxu0 0.0
      %1396 = vmatprep.subr.mxu0 0.0
      %1397 = vmatpush1.msra.mxu0 0.0
      %1398 = vmatprep.subr.mxu0 0.0
      %1399 = vmatpush1.msra.mxu0 0.0
      %1400 = vmatprep.subr.mxu0 0.0
      %1401 = vmatpush1.msra.mxu0 0.0
      %1402 = vmatprep.subr.mxu0 0.0
      %1403 = vmatpush1.msra.mxu0 0.0
      %1404 = vmatprep.subr.mxu0 0.0
      %1405 = vmatpush1.msra.mxu0 0.0
      %1406 = vmatprep.subr.mxu0 0.0
      %1407 = vmatpush1.msra.mxu0 0.0
      %1408 = vmatprep.subr.mxu0 0.0
      %1409 = vmatpush1.msra.mxu0 0.0
      %1410 = vmatprep.subr.mxu0 0.0
      %1411 = vmatpush1.msra.mxu0 0.0
      %1412 = vmatprep.subr.mxu0 0.0
      %1413 = vmatpush1.msra.mxu0 0.0
      %1414 = vmatprep.subr.mxu0 0.0
      %1415 = vmatpush1.msra.mxu0 0.0
      %1416 = vmatprep.subr.mxu0 0.0
      %1417 = vmatpush1.msra.mxu0 0.0
      %1418 = vmatprep.subr.mxu0 0.0
      %1419 = vmatpush1.msra.mxu0 0.0
      %1420 = vmatprep.subr.mxu0 0.0
      %1421 = vmatpush1.msra.mxu0 0.0
      %1422 = vmatprep.subr.mxu0 0.0
      %1423 = vmatpush1.msra.mxu0 0.0
      %1424 = vmatprep.subr.mxu0 0.0
      %1425 = vmatpush1.msra.mxu0 0.0
      %1426 = vmatprep.subr.mxu0 0.0
      %1427 = vmatpush1.msra.mxu0 0.0
      %1428 = vmatprep.mubr.f32.mxu0 0.0
      %1429 = vmatmul.mubr.f32.gmra.mrb[0].mxu0 %v1285
      %v1430 = vpop.f32.mrb[0].mxu0
      %v1431 = vadd.f32 0.0, %v1430
      %v1432 = vpop.f32.mrb[0].mxu0
      %1433 = vdwg.mxu0
      %v1434 = vadd.f32 %v1267, %v1360
      %v1435 = vadd.f32 %v1268, %v1362
      %v1436 = vadd.f32 %v1269, %v1431
      %s1437 = scalar_lea.vmem %s1, 56
      %v1438 = vld [vmem:[%s1437] sm:$0xff]
      %1439 = vrot.lane.b32.xlu0 %v279, 91
      %v1440 = vpop.permute.xlu0 %1439
      %1441 = vrot.lane.b32.xlu0 %v286, 91
      %v1442 = vpop.permute.xlu0 %1441
      %1443 = vrot.lane.b32.xlu0 %v280, 91
      %v1444 = vpop.permute.xlu0 %1443
      %1445 = vrot.lane.b32.xlu0 %v287, 91
      %v1446 = vpop.permute.xlu0 %1445
      %vm1447 = vcmask 744448
      %v1448 = vsel %vm1447, %v1440, %v1442
      %v1449 = vsel %vm1447, %v1442, %v1444
      %v1450 = vsel %vm1447, %v1444, %v1446
      %v1452 = vsel %vm300, %v1438, 0
      %v1454 = vsel %vm304, %v1448, 0
      %v1456 = vsel %vm304, %v1449, 0
      %v1458 = vsel %vm304, %v1450, 0
      %1460 = vmatprep.subr.mxu0 %v1456
      %1461 = vmatpush1.msra.mxu0 %v1454
      %1462 = vmatprep.subr.mxu0 0.0
      %1463 = vmatpush1.msra.mxu0 0.0
      %1464 = vmatprep.subr.mxu0 0.0
      %1465 = vmatpush1.msra.mxu0 0.0
      %1466 = vmatprep.subr.mxu0 0.0
      %1467 = vmatpush1.msra.mxu0 0.0
      %1468 = vmatprep.subr.mxu0 0.0
      %1469 = vmatpush1.msra.mxu0 0.0
      %1470 = vmatprep.subr.mxu0 0.0
      %1471 = vmatpush1.msra.mxu0 0.0
      %1472 = vmatprep.subr.mxu0 0.0
      %1473 = vmatpush1.msra.mxu0 0.0
      %1474 = vmatprep.subr.mxu0 0.0
      %1475 = vmatpush1.msra.mxu0 0.0
      %1476 = vmatprep.subr.mxu0 0.0
      %1477 = vmatpush1.msra.mxu0 0.0
      %1478 = vmatprep.subr.mxu0 0.0
      %1479 = vmatpush1.msra.mxu0 0.0
      %1480 = vmatprep.subr.mxu0 0.0
      %1481 = vmatpush1.msra.mxu0 0.0
      %1482 = vmatprep.subr.mxu0 0.0
      %1483 = vmatpush1.msra.mxu0 0.0
      %1484 = vmatprep.subr.mxu0 0.0
      %1485 = vmatpush1.msra.mxu0 0.0
      %1486 = vmatprep.subr.mxu0 0.0
      %1487 = vmatpush1.msra.mxu0 0.0
      %1488 = vmatprep.subr.mxu0 0.0
      %1489 = vmatpush1.msra.mxu0 0.0
      %1490 = vmatprep.subr.mxu0 0.0
      %1491 = vmatpush1.msra.mxu0 0.0
      %1492 = vmatprep.subr.mxu0 0.0
      %1493 = vmatpush1.msra.mxu0 0.0
      %1494 = vmatprep.subr.mxu0 0.0
      %1495 = vmatpush1.msra.mxu0 0.0
      %1496 = vmatprep.subr.mxu0 0.0
      %1497 = vmatpush1.msra.mxu0 0.0
      %1498 = vmatprep.subr.mxu0 0.0
      %1499 = vmatpush1.msra.mxu0 0.0
      %1500 = vmatprep.subr.mxu0 0.0
      %1501 = vmatpush1.msra.mxu0 0.0
      %1502 = vmatprep.subr.mxu0 0.0
      %1503 = vmatpush1.msra.mxu0 0.0
      %1504 = vmatprep.subr.mxu0 0.0
      %1505 = vmatpush1.msra.mxu0 0.0
      %1506 = vmatprep.subr.mxu0 0.0
      %1507 = vmatpush1.msra.mxu0 0.0
      %1508 = vmatprep.subr.mxu0 0.0
      %1509 = vmatpush1.msra.mxu0 0.0
      %1510 = vmatprep.subr.mxu0 0.0
      %1511 = vmatpush1.msra.mxu0 0.0
      %1512 = vmatprep.subr.mxu0 0.0
      %1513 = vmatpush1.msra.mxu0 0.0
      %1514 = vmatprep.subr.mxu0 0.0
      %1515 = vmatpush1.msra.mxu0 0.0
      %1516 = vmatprep.subr.mxu0 0.0
      %1517 = vmatpush1.msra.mxu0 0.0
      %1518 = vmatprep.subr.mxu0 0.0
      %1519 = vmatpush1.msra.mxu0 0.0
      %1520 = vmatprep.subr.mxu0 0.0
      %1521 = vmatpush1.msra.mxu0 0.0
      %1522 = vmatprep.subr.mxu0 0.0
      %1523 = vmatpush1.msra.mxu0 0.0
      %1524 = vmatprep.mubr.f32.mxu0 0.0
      %1525 = vmatmul.mubr.f32.gmra.mrb[0].mxu0 %v1452
      %v1526 = vpop.f32.mrb[0].mxu0
      %v1527 = vadd.f32 0.0, %v1526
      %v1528 = vpop.f32.mrb[0].mxu0
      %v1529 = vadd.f32 0.0, %v1528
      %1530 = vdwg.mxu0
      %1531 = vmatprep.subr.mxu0 0.0
      %1532 = vmatpush1.msra.mxu0 %v1458
      %1533 = vmatprep.subr.mxu0 0.0
      %1534 = vmatpush1.msra.mxu0 0.0
      %1535 = vmatprep.subr.mxu0 0.0
      %1536 = vmatpush1.msra.mxu0 0.0
      %1537 = vmatprep.subr.mxu0 0.0
      %1538 = vmatpush1.msra.mxu0 0.0
      %1539 = vmatprep.subr.mxu0 0.0
      %1540 = vmatpush1.msra.mxu0 0.0
      %1541 = vmatprep.subr.mxu0 0.0
      %1542 = vmatpush1.msra.mxu0 0.0
      %1543 = vmatprep.subr.mxu0 0.0
      %1544 = vmatpush1.msra.mxu0 0.0
      %1545 = vmatprep.subr.mxu0 0.0
      %1546 = vmatpush1.msra.mxu0 0.0
      %1547 = vmatprep.subr.mxu0 0.0
      %1548 = vmatpush1.msra.mxu0 0.0
      %1549 = vmatprep.subr.mxu0 0.0
      %1550 = vmatpush1.msra.mxu0 0.0
      %1551 = vmatprep.subr.mxu0 0.0
      %1552 = vmatpush1.msra.mxu0 0.0
      %1553 = vmatprep.subr.mxu0 0.0
      %1554 = vmatpush1.msra.mxu0 0.0
      %1555 = vmatprep.subr.mxu0 0.0
      %1556 = vmatpush1.msra.mxu0 0.0
      %1557 = vmatprep.subr.mxu0 0.0
      %1558 = vmatpush1.msra.mxu0 0.0
      %1559 = vmatprep.subr.mxu0 0.0
      %1560 = vmatpush1.msra.mxu0 0.0
      %1561 = vmatprep.subr.mxu0 0.0
      %1562 = vmatpush1.msra.mxu0 0.0
      %1563 = vmatprep.subr.mxu0 0.0
      %1564 = vmatpush1.msra.mxu0 0.0
      %1565 = vmatprep.subr.mxu0 0.0
      %1566 = vmatpush1.msra.mxu0 0.0
      %1567 = vmatprep.subr.mxu0 0.0
      %1568 = vmatpush1.msra.mxu0 0.0
      %1569 = vmatprep.subr.mxu0 0.0
      %1570 = vmatpush1.msra.mxu0 0.0
      %1571 = vmatprep.subr.mxu0 0.0
      %1572 = vmatpush1.msra.mxu0 0.0
      %1573 = vmatprep.subr.mxu0 0.0
      %1574 = vmatpush1.msra.mxu0 0.0
      %1575 = vmatprep.subr.mxu0 0.0
      %1576 = vmatpush1.msra.mxu0 0.0
      %1577 = vmatprep.subr.mxu0 0.0
      %1578 = vmatpush1.msra.mxu0 0.0
      %1579 = vmatprep.subr.mxu0 0.0
      %1580 = vmatpush1.msra.mxu0 0.0
      %1581 = vmatprep.subr.mxu0 0.0
      %1582 = vmatpush1.msra.mxu0 0.0
      %1583 = vmatprep.subr.mxu0 0.0
      %1584 = vmatpush1.msra.mxu0 0.0
      %1585 = vmatprep.subr.mxu0 0.0
      %1586 = vmatpush1.msra.mxu0 0.0
      %1587 = vmatprep.subr.mxu0 0.0
      %1588 = vmatpush1.msra.mxu0 0.0
      %1589 = vmatprep.subr.mxu0 0.0
      %1590 = vmatpush1.msra.mxu0 0.0
      %1591 = vmatprep.subr.mxu0 0.0
      %1592 = vmatpush1.msra.mxu0 0.0
      %1593 = vmatprep.subr.mxu0 0.0
      %1594 = vmatpush1.msra.mxu0 0.0
      %1595 = vmatprep.mubr.f32.mxu0 0.0
      %1596 = vmatmul.mubr.f32.gmra.mrb[0].mxu0 %v1452
      %v1597 = vpop.f32.mrb[0].mxu0
      %v1598 = vadd.f32 0.0, %v1597
      %v1599 = vpop.f32.mrb[0].mxu0
      %1600 = vdwg.mxu0
      %v1601 = vadd.f32 %v1434, %v1527
      %v1602 = vadd.f32 %v1435, %v1529
      %v1603 = vadd.f32 %v1436, %v1598
      %s1604 = scalar_lea.vmem %s1, 64
      %v1605 = vld [vmem:[%s1604] sm:$0xff]
      %1606 = vrot.lane.b32.xlu0 %v279, 90
      %v1607 = vpop.permute.xlu0 %1606
      %1608 = vrot.lane.b32.xlu0 %v286, 90
      %v1609 = vpop.permute.xlu0 %1608
      %1610 = vrot.lane.b32.xlu0 %v280, 90
      %v1611 = vpop.permute.xlu0 %1610
      %1612 = vrot.lane.b32.xlu0 %v287, 90
      %v1613 = vpop.permute.xlu0 %1612
      %vm1614 = vcmask 736256
      %v1615 = vsel %vm1614, %v1607, %v1609
      %v1616 = vsel %vm1614, %v1609, %v1611
      %v1617 = vsel %vm1614, %v1611, %v1613
      %v1619 = vsel %vm300, %v1605, 0
      %v1621 = vsel %vm304, %v1615, 0
      %v1623 = vsel %vm304, %v1616, 0
      %v1625 = vsel %vm304, %v1617, 0
      %1627 = vmatprep.subr.mxu0 %v1623
      %1628 = vmatpush1.msra.mxu0 %v1621
      %1629 = vmatprep.subr.mxu0 0.0
      %1630 = vmatpush1.msra.mxu0 0.0
      %1631 = vmatprep.subr.mxu0 0.0
      %1632 = vmatpush1.msra.mxu0 0.0
      %1633 = vmatprep.subr.mxu0 0.0
      %1634 = vmatpush1.msra.mxu0 0.0
      %1635 = vmatprep.subr.mxu0 0.0
      %1636 = vmatpush1.msra.mxu0 0.0
      %1637 = vmatprep.subr.mxu0 0.0
      %1638 = vmatpush1.msra.mxu0 0.0
      %1639 = vmatprep.subr.mxu0 0.0
      %1640 = vmatpush1.msra.mxu0 0.0
      %1641 = vmatprep.subr.mxu0 0.0
      %1642 = vmatpush1.msra.mxu0 0.0
      %1643 = vmatprep.subr.mxu0 0.0
      %1644 = vmatpush1.msra.mxu0 0.0
      %1645 = vmatprep.subr.mxu0 0.0
      %1646 = vmatpush1.msra.mxu0 0.0
      %1647 = vmatprep.subr.mxu0 0.0
      %1648 = vmatpush1.msra.mxu0 0.0
      %1649 = vmatprep.subr.mxu0 0.0
      %1650 = vmatpush1.msra.mxu0 0.0
      %1651 = vmatprep.subr.mxu0 0.0
      %1652 = vmatpush1.msra.mxu0 0.0
      %1653 = vmatprep.subr.mxu0 0.0
      %1654 = vmatpush1.msra.mxu0 0.0
      %1655 = vmatprep.subr.mxu0 0.0
      %1656 = vmatpush1.msra.mxu0 0.0
      %1657 = vmatprep.subr.mxu0 0.0
      %1658 = vmatpush1.msra.mxu0 0.0
      %1659 = vmatprep.subr.mxu0 0.0
      %1660 = vmatpush1.msra.mxu0 0.0
      %1661 = vmatprep.subr.mxu0 0.0
      %1662 = vmatpush1.msra.mxu0 0.0
      %1663 = vmatprep.subr.mxu0 0.0
      %1664 = vmatpush1.msra.mxu0 0.0
      %1665 = vmatprep.subr.mxu0 0.0
      %1666 = vmatpush1.msra.mxu0 0.0
      %1667 = vmatprep.subr.mxu0 0.0
      %1668 = vmatpush1.msra.mxu0 0.0
      %1669 = vmatprep.subr.mxu0 0.0
      %1670 = vmatpush1.msra.mxu0 0.0
      %1671 = vmatprep.subr.mxu0 0.0
      %1672 = vmatpush1.msra.mxu0 0.0
      %1673 = vmatprep.subr.mxu0 0.0
      %1674 = vmatpush1.msra.mxu0 0.0
      %1675 = vmatprep.subr.mxu0 0.0
      %1676 = vmatpush1.msra.mxu0 0.0
      %1677 = vmatprep.subr.mxu0 0.0
      %1678 = vmatpush1.msra.mxu0 0.0
      %1679 = vmatprep.subr.mxu0 0.0
      %1680 = vmatpush1.msra.mxu0 0.0
      %1681 = vmatprep.subr.mxu0 0.0
      %1682 = vmatpush1.msra.mxu0 0.0
      %1683 = vmatprep.subr.mxu0 0.0
      %1684 = vmatpush1.msra.mxu0 0.0
      %1685 = vmatprep.subr.mxu0 0.0
      %1686 = vmatpush1.msra.mxu0 0.0
      %1687 = vmatprep.subr.mxu0 0.0
      %1688 = vmatpush1.msra.mxu0 0.0
      %1689 = vmatprep.subr.mxu0 0.0
      %1690 = vmatpush1.msra.mxu0 0.0
      %1691 = vmatprep.mubr.f32.mxu0 0.0
      %1692 = vmatmul.mubr.f32.gmra.mrb[0].mxu0 %v1619
      %v1693 = vpop.f32.mrb[0].mxu0
      %v1694 = vadd.f32 0.0, %v1693
      %v1695 = vpop.f32.mrb[0].mxu0
      %v1696 = vadd.f32 0.0, %v1695
      %1697 = vdwg.mxu0
      %1698 = vmatprep.subr.mxu0 0.0
      %1699 = vmatpush1.msra.mxu0 %v1625
      %1700 = vmatprep.subr.mxu0 0.0
      %1701 = vmatpush1.msra.mxu0 0.0
      %1702 = vmatprep.subr.mxu0 0.0
      %1703 = vmatpush1.msra.mxu0 0.0
      %1704 = vmatprep.subr.mxu0 0.0
      %1705 = vmatpush1.msra.mxu0 0.0
      %1706 = vmatprep.subr.mxu0 0.0
      %1707 = vmatpush1.msra.mxu0 0.0
      %1708 = vmatprep.subr.mxu0 0.0
      %1709 = vmatpush1.msra.mxu0 0.0
      %1710 = vmatprep.subr.mxu0 0.0
      %1711 = vmatpush1.msra.mxu0 0.0
      %1712 = vmatprep.subr.mxu0 0.0
      %1713 = vmatpush1.msra.mxu0 0.0
      %1714 = vmatprep.subr.mxu0 0.0
      %1715 = vmatpush1.msra.mxu0 0.0
      %1716 = vmatprep.subr.mxu0 0.0
      %1717 = vmatpush1.msra.mxu0 0.0
      %1718 = vmatprep.subr.mxu0 0.0
      %1719 = vmatpush1.msra.mxu0 0.0
      %1720 = vmatprep.subr.mxu0 0.0
      %1721 = vmatpush1.msra.mxu0 0.0
      %1722 = vmatprep.subr.mxu0 0.0
      %1723 = vmatpush1.msra.mxu0 0.0
      %1724 = vmatprep.subr.mxu0 0.0
      %1725 = vmatpush1.msra.mxu0 0.0
      %1726 = vmatprep.subr.mxu0 0.0
      %1727 = vmatpush1.msra.mxu0 0.0
      %1728 = vmatprep.subr.mxu0 0.0
      %1729 = vmatpush1.msra.mxu0 0.0
      %1730 = vmatprep.subr.mxu0 0.0
      %1731 = vmatpush1.msra.mxu0 0.0
      %1732 = vmatprep.subr.mxu0 0.0
      %1733 = vmatpush1.msra.mxu0 0.0
      %1734 = vmatprep.subr.mxu0 0.0
      %1735 = vmatpush1.msra.mxu0 0.0
      %1736 = vmatprep.subr.mxu0 0.0
      %1737 = vmatpush1.msra.mxu0 0.0
      %1738 = vmatprep.subr.mxu0 0.0
      %1739 = vmatpush1.msra.mxu0 0.0
      %1740 = vmatprep.subr.mxu0 0.0
      %1741 = vmatpush1.msra.mxu0 0.0
      %1742 = vmatprep.subr.mxu0 0.0
      %1743 = vmatpush1.msra.mxu0 0.0
      %1744 = vmatprep.subr.mxu0 0.0
      %1745 = vmatpush1.msra.mxu0 0.0
      %1746 = vmatprep.subr.mxu0 0.0
      %1747 = vmatpush1.msra.mxu0 0.0
      %1748 = vmatprep.subr.mxu0 0.0
      %1749 = vmatpush1.msra.mxu0 0.0
      %1750 = vmatprep.subr.mxu0 0.0
      %1751 = vmatpush1.msra.mxu0 0.0
      %1752 = vmatprep.subr.mxu0 0.0
      %1753 = vmatpush1.msra.mxu0 0.0
      %1754 = vmatprep.subr.mxu0 0.0
      %1755 = vmatpush1.msra.mxu0 0.0
      %1756 = vmatprep.subr.mxu0 0.0
      %1757 = vmatpush1.msra.mxu0 0.0
      %1758 = vmatprep.subr.mxu0 0.0
      %1759 = vmatpush1.msra.mxu0 0.0
      %1760 = vmatprep.subr.mxu0 0.0
      %1761 = vmatpush1.msra.mxu0 0.0
      %1762 = vmatprep.mubr.f32.mxu0 0.0
      %1763 = vmatmul.mubr.f32.gmra.mrb[0].mxu0 %v1619
      %v1764 = vpop.f32.mrb[0].mxu0
      %v1765 = vadd.f32 0.0, %v1764
      %v1766 = vpop.f32.mrb[0].mxu0
      %1767 = vdwg.mxu0
      %v1768 = vadd.f32 %v1601, %v1694
      %v1769 = vadd.f32 %v1602, %v1696
      %v1770 = vadd.f32 %v1603, %v1765
      %v1771 = vld [vmem:[%s2] sm:$0xff]
      %v1772 = vld [vmem:[%s2 + $0x8] sm:$0xff]
      %v1773 = vld [vmem:[%s2 + $0x10] sm:$0xff]
      %v1774 = vld [vmem:[%s2 + $0x18] sm:$0xff]
      %v1775 = vld [vmem:[%s2 + $0x20] sm:$0xff]
      %v1776 = vld [vmem:[%s2 + $0x28] sm:$0xff]
      %v1777 = vld [vmem:[%s2 + $0x30] sm:$0xff]
      %v1778 = vld [vmem:[%s2 + $0x38] sm:$0xff]
      %v1779 = vld [vmem:[%s2 + $0x40] sm:$0xff]
      %v1780 = vld [vmem:[%s2 + $0x48] sm:$0xff]
      %v1781 = vld [vmem:[%s2 + $0x50] sm:$0xff]
      %v1782 = vld [vmem:[%s2 + $0x58] sm:$0xff]
      %v1783 = vld [vmem:[%s2 + $0x60] sm:$0xff]
      %v1784 = vld [vmem:[%s2 + $0x68] sm:$0xff]
      %v1785 = vld [vmem:[%s2 + $0x70] sm:$0xff]
      %v1786 = vld [vmem:[%s2 + $0x78] sm:$0xff]
      %v1787 = vld [vmem:[%s2 + $0x80] sm:$0xff]
      %v1788 = vld [vmem:[%s2 + $0x88] sm:$0xff]
      %v1789 = vld [vmem:[%s2 + $0x90] sm:$0xff]
      %v1790 = vld [vmem:[%s2 + $0x98] sm:$0xff]
      %v1791 = vld [vmem:[%s2 + $0xa0] sm:$0xff]
      %v1792 = vld [vmem:[%s2 + $0xa8] sm:$0xff]
      %v1793 = vld [vmem:[%s2 + $0xb0] sm:$0xff]
      %v1794 = vld [vmem:[%s2 + $0xb8] sm:$0xff]
      %v1795 = vld [vmem:[%s2 + $0xc0] sm:$0xff]
      %v1796 = vld [vmem:[%s2 + $0xc8] sm:$0xff]
      %v1797 = vld [vmem:[%s2 + $0xd0] sm:$0xff]
      %v1798 = vld [vmem:[%s2 + $0xd8] sm:$0xff]
      %v1799 = vld [vmem:[%s2 + $0xe0] sm:$0xff]
      %v1800 = vld [vmem:[%s2 + $0xe8] sm:$0xff]
      %v1801 = vld [vmem:[%s2 + $0xf0] sm:$0xff]
      %v1802 = vld [vmem:[%s2 + $0xf8] sm:$0xff]
      %v1803 = vld [vmem:[%s2 + $0x100] sm:$0xff]
      %v1804 = vld [vmem:[%s2 + $0x108] sm:$0xff]
      %v1805 = vld [vmem:[%s2 + $0x110] sm:$0xff]
      %v1806 = vld [vmem:[%s2 + $0x118] sm:$0xff]
      %v1807 = vld [vmem:[%s2 + $0x120] sm:$0xff]
      %v1808 = vld [vmem:[%s2 + $0x128] sm:$0xff]
      %v1809 = vld [vmem:[%s2 + $0x130] sm:$0xff]
      %v1810 = vld [vmem:[%s2 + $0x138] sm:$0xff]
      %v1811 = vld [vmem:[%s2 + $0x140] sm:$0xff]
      %v1812 = vld [vmem:[%s2 + $0x148] sm:$0xff]
      %v1813 = vld [vmem:[%s2 + $0x150] sm:$0xff]
      %v1814 = vld [vmem:[%s2 + $0x158] sm:$0xff]
      %v1815 = vld [vmem:[%s2 + $0x160] sm:$0xff]
      %v1816 = vld [vmem:[%s2 + $0x168] sm:$0xff]
      %v1817 = vld [vmem:[%s2 + $0x170] sm:$0xff]
      %v1818 = vld [vmem:[%s2 + $0x178] sm:$0xff]
      %v1819 = vld [vmem:[%s3] sm:$0xf]
      %v1820 = vld [vmem:[%s4] sm:$0xff]
      %1821 = vmatprep.subr.mxu0 0.0
      %1822 = vmatpush1.msra.mxu0 %v1771
      %1823 = vmatprep.subr.mxu0 0.0
      %1824 = vmatpush1.msra.mxu0 %v1772
      %1825 = vmatprep.subr.mxu0 0.0
      %1826 = vmatpush1.msra.mxu0 %v1773
      %1827 = vmatprep.subr.mxu0 0.0
      %1828 = vmatpush1.msra.mxu0 %v1774
      %1829 = vmatprep.subr.mxu0 0.0
      %1830 = vmatpush1.msra.mxu0 %v1775
      %1831 = vmatprep.subr.mxu0 0.0
      %1832 = vmatpush1.msra.mxu0 %v1776
      %1833 = vmatprep.subr.mxu0 0.0
      %1834 = vmatpush1.msra.mxu0 %v1777
      %1835 = vmatprep.subr.mxu0 0.0
      %1836 = vmatpush1.msra.mxu0 %v1778
      %1837 = vmatprep.subr.mxu0 0.0
      %1838 = vmatpush1.msra.mxu0 %v1779
      %1839 = vmatprep.subr.mxu0 0.0
      %1840 = vmatpush1.msra.mxu0 %v1780
      %1841 = vmatprep.subr.mxu0 0.0
      %1842 = vmatpush1.msra.mxu0 %v1781
      %1843 = vmatprep.subr.mxu0 0.0
      %1844 = vmatpush1.msra.mxu0 %v1782
      %1845 = vmatprep.subr.mxu0 0.0
      %1846 = vmatpush1.msra.mxu0 %v1783
      %1847 = vmatprep.subr.mxu0 0.0
      %1848 = vmatpush1.msra.mxu0 %v1784
      %1849 = vmatprep.subr.mxu0 0.0
      %1850 = vmatpush1.msra.mxu0 %v1785
      %1851 = vmatprep.subr.mxu0 0.0
      %1852 = vmatpush1.msra.mxu0 %v1786
      %1853 = vmatprep.subr.mxu0 0.0
      %1854 = vmatpush1.msra.mxu0 %v1787
      %1855 = vmatprep.subr.mxu0 0.0
      %1856 = vmatpush1.msra.mxu0 %v1788
      %1857 = vmatprep.subr.mxu0 0.0
      %1858 = vmatpush1.msra.mxu0 %v1789
      %1859 = vmatprep.subr.mxu0 0.0
      %1860 = vmatpush1.msra.mxu0 %v1790
      %1861 = vmatprep.subr.mxu0 0.0
      %1862 = vmatpush1.msra.mxu0 %v1791
      %1863 = vmatprep.subr.mxu0 0.0
      %1864 = vmatpush1.msra.mxu0 %v1792
      %1865 = vmatprep.subr.mxu0 0.0
      %1866 = vmatpush1.msra.mxu0 %v1793
      %1867 = vmatprep.subr.mxu0 0.0
      %1868 = vmatpush1.msra.mxu0 %v1794
      %1869 = vmatprep.subr.mxu0 0.0
      %1870 = vmatpush1.msra.mxu0 %v1795
      %1871 = vmatprep.subr.mxu0 0.0
      %1872 = vmatpush1.msra.mxu0 %v1796
      %1873 = vmatprep.subr.mxu0 0.0
      %1874 = vmatpush1.msra.mxu0 %v1797
      %1875 = vmatprep.subr.mxu0 0.0
      %1876 = vmatpush1.msra.mxu0 %v1798
      %1877 = vmatprep.subr.mxu0 0.0
      %1878 = vmatpush1.msra.mxu0 %v1799
      %1879 = vmatprep.subr.mxu0 0.0
      %1880 = vmatpush1.msra.mxu0 %v1800
      %1881 = vmatprep.subr.mxu0 0.0
      %1882 = vmatpush1.msra.mxu0 %v1801
      %1883 = vmatprep.subr.mxu0 0.0
      %1884 = vmatpush1.msra.mxu0 %v1802
      %1885 = vmatprep.mubr.f32.mxu0 %v1769
      %1886 = vmatmul.mubr.f32.gmra.mrb[0].mxu0 %v1768
      %v1887 = vpop.f32.mrb[0].mxu0
      %v1888 = vadd.f32 0.0, %v1887
      %v1889 = vpop.f32.mrb[0].mxu0
      %1890 = vdwg.mxu0
      %1891 = vmatprep.subr.mxu0 0.0
      %1892 = vmatpush1.msra.mxu0 %v1803
      %1893 = vmatprep.subr.mxu0 0.0
      %1894 = vmatpush1.msra.mxu0 %v1804
      %1895 = vmatprep.subr.mxu0 0.0
      %1896 = vmatpush1.msra.mxu0 %v1805
      %1897 = vmatprep.subr.mxu0 0.0
      %1898 = vmatpush1.msra.mxu0 %v1806
      %1899 = vmatprep.subr.mxu0 0.0
      %1900 = vmatpush1.msra.mxu0 %v1807
      %1901 = vmatprep.subr.mxu0 0.0
      %1902 = vmatpush1.msra.mxu0 %v1808
      %1903 = vmatprep.subr.mxu0 0.0
      %1904 = vmatpush1.msra.mxu0 %v1809
      %1905 = vmatprep.subr.mxu0 0.0
      %1906 = vmatpush1.msra.mxu0 %v1810
      %1907 = vmatprep.subr.mxu0 0.0
      %1908 = vmatpush1.msra.mxu0 %v1811
      %1909 = vmatprep.subr.mxu0 0.0
      %1910 = vmatpush1.msra.mxu0 %v1812
      %1911 = vmatprep.subr.mxu0 0.0
      %1912 = vmatpush1.msra.mxu0 %v1813
      %1913 = vmatprep.subr.mxu0 0.0
      %1914 = vmatpush1.msra.mxu0 %v1814
      %1915 = vmatprep.subr.mxu0 0.0
      %1916 = vmatpush1.msra.mxu0 %v1815
      %1917 = vmatprep.subr.mxu0 0.0
      %1918 = vmatpush1.msra.mxu0 %v1816
      %1919 = vmatprep.subr.mxu0 0.0
      %1920 = vmatpush1.msra.mxu0 %v1817
      %1921 = vmatprep.subr.mxu0 0.0
      %1922 = vmatpush1.msra.mxu0 %v1818
      %1923 = vmatprep.subr.mxu0 0.0
      %1924 = vmatpush1.msra.mxu0 0.0
      %1925 = vmatprep.subr.mxu0 0.0
      %1926 = vmatpush1.msra.mxu0 0.0
      %1927 = vmatprep.subr.mxu0 0.0
      %1928 = vmatpush1.msra.mxu0 0.0
      %1929 = vmatprep.subr.mxu0 0.0
      %1930 = vmatpush1.msra.mxu0 0.0
      %1931 = vmatprep.subr.mxu0 0.0
      %1932 = vmatpush1.msra.mxu0 0.0
      %1933 = vmatprep.subr.mxu0 0.0
      %1934 = vmatpush1.msra.mxu0 0.0
      %1935 = vmatprep.subr.mxu0 0.0
      %1936 = vmatpush1.msra.mxu0 0.0
      %1937 = vmatprep.subr.mxu0 0.0
      %1938 = vmatpush1.msra.mxu0 0.0
      %1939 = vmatprep.subr.mxu0 0.0
      %1940 = vmatpush1.msra.mxu0 0.0
      %1941 = vmatprep.subr.mxu0 0.0
      %1942 = vmatpush1.msra.mxu0 0.0
      %1943 = vmatprep.subr.mxu0 0.0
      %1944 = vmatpush1.msra.mxu0 0.0
      %1945 = vmatprep.subr.mxu0 0.0
      %1946 = vmatpush1.msra.mxu0 0.0
      %1947 = vmatprep.subr.mxu0 0.0
      %1948 = vmatpush1.msra.mxu0 0.0
      %1949 = vmatprep.subr.mxu0 0.0
      %1950 = vmatpush1.msra.mxu0 0.0
      %1951 = vmatprep.subr.mxu0 0.0
      %1952 = vmatpush1.msra.mxu0 0.0
      %1953 = vmatprep.subr.mxu0 0.0
      %1954 = vmatpush1.msra.mxu0 0.0
      %1955 = vmatprep.mubr.f32.mxu0 0.0
      %1956 = vmatmul.mubr.f32.gmra.mrb[0].mxu0 %v1770
      %v1957 = vpop.f32.mrb[0].mxu0
      %v1958 = vadd.f32 %v1888, %v1957
      %v1959 = vpop.f32.mrb[0].mxu0
      %1960 = vdwg.mxu0
      %vm1961 = vcmask 64512
      %v1963 = vsel %vm1961, %v1819, 0
      %1965 = vmatprep.subr.mxu0 0.0
      %1966 = vmatpush1.msra.mxu0 %v1958
      %1967 = vmatprep.subr.mxu0 0.0
      %1968 = vmatpush1.msra.mxu0 0.0
      %1969 = vmatprep.subr.mxu0 0.0
      %1970 = vmatpush1.msra.mxu0 0.0
      %1971 = vmatprep.subr.mxu0 0.0
      %1972 = vmatpush1.msra.mxu0 0.0
      %1973 = vmatprep.subr.mxu0 0.0
      %1974 = vmatpush1.msra.mxu0 0.0
      %1975 = vmatprep.subr.mxu0 0.0
      %1976 = vmatpush1.msra.mxu0 0.0
      %1977 = vmatprep.subr.mxu0 0.0
      %1978 = vmatpush1.msra.mxu0 0.0
      %1979 = vmatprep.subr.mxu0 0.0
      %1980 = vmatpush1.msra.mxu0 0.0
      %1981 = vmatprep.subr.mxu0 0.0
      %1982 = vmatpush1.msra.mxu0 0.0
      %1983 = vmatprep.subr.mxu0 0.0
      %1984 = vmatpush1.msra.mxu0 0.0
      %1985 = vmatprep.subr.mxu0 0.0
      %1986 = vmatpush1.msra.mxu0 0.0
      %1987 = vmatprep.subr.mxu0 0.0
      %1988 = vmatpush1.msra.mxu0 0.0
      %1989 = vmatprep.subr.mxu0 0.0
      %1990 = vmatpush1.msra.mxu0 0.0
      %1991 = vmatprep.subr.mxu0 0.0
      %1992 = vmatpush1.msra.mxu0 0.0
      %1993 = vmatprep.subr.mxu0 0.0
      %1994 = vmatpush1.msra.mxu0 0.0
      %1995 = vmatprep.subr.mxu0 0.0
      %1996 = vmatpush1.msra.mxu0 0.0
      %1997 = vmatprep.subr.mxu0 0.0
      %1998 = vmatpush1.msra.mxu0 0.0
      %1999 = vmatprep.subr.mxu0 0.0
      %2000 = vmatpush1.msra.mxu0 0.0
      %2001 = vmatprep.subr.mxu0 0.0
      %2002 = vmatpush1.msra.mxu0 0.0
      %2003 = vmatprep.subr.mxu0 0.0
      %2004 = vmatpush1.msra.mxu0 0.0
      %2005 = vmatprep.subr.mxu0 0.0
      %2006 = vmatpush1.msra.mxu0 0.0
      %2007 = vmatprep.subr.mxu0 0.0
      %2008 = vmatpush1.msra.mxu0 0.0
      %2009 = vmatprep.subr.mxu0 0.0
      %2010 = vmatpush1.msra.mxu0 0.0
      %2011 = vmatprep.subr.mxu0 0.0
      %2012 = vmatpush1.msra.mxu0 0.0
      %2013 = vmatprep.subr.mxu0 0.0
      %2014 = vmatpush1.msra.mxu0 0.0
      %2015 = vmatprep.subr.mxu0 0.0
      %2016 = vmatpush1.msra.mxu0 0.0
      %2017 = vmatprep.subr.mxu0 0.0
      %2018 = vmatpush1.msra.mxu0 0.0
      %2019 = vmatprep.subr.mxu0 0.0
      %2020 = vmatpush1.msra.mxu0 0.0
      %2021 = vmatprep.subr.mxu0 0.0
      %2022 = vmatpush1.msra.mxu0 0.0
      %2023 = vmatprep.subr.mxu0 0.0
      %2024 = vmatpush1.msra.mxu0 0.0
      %2025 = vmatprep.subr.mxu0 0.0
      %2026 = vmatpush1.msra.mxu0 0.0
      %2027 = vmatprep.subr.mxu0 0.0
      %2028 = vmatpush1.msra.mxu0 0.0
      %2029 = vmatprep.mubr.f32.mxu0 0.0
      %2030 = vmatmul.mubr.f32.gmra.mrb[0].mxu0 %v1963
      %v2031 = vpop.f32.mrb[0].mxu0
      %v2032 = vadd.f32 0.0, %v2031
      %v2033 = vpop.f32.mrb[0].mxu0
      %2034 = vdwg.mxu0
      %v2036 = vsel %vm300, %v1820, 0
      %v2039 = vsel %vm304, %v2032, 0
      %2041 = vmatprep.subr.mxu0 0.0
      %2042 = vmatpush1.msra.mxu0 %v2039
      %2043 = vmatprep.subr.mxu0 0.0
      %2044 = vmatpush1.msra.mxu0 0.0
      %2045 = vmatprep.subr.mxu0 0.0
      %2046 = vmatpush1.msra.mxu0 0.0
      %2047 = vmatprep.subr.mxu0 0.0
      %2048 = vmatpush1.msra.mxu0 0.0
      %2049 = vmatprep.subr.mxu0 0.0
      %2050 = vmatpush1.msra.mxu0 0.0
      %2051 = vmatprep.subr.mxu0 0.0
      %2052 = vmatpush1.msra.mxu0 0.0
      %2053 = vmatprep.subr.mxu0 0.0
      %2054 = vmatpush1.msra.mxu0 0.0
      %2055 = vmatprep.subr.mxu0 0.0
      %2056 = vmatpush1.msra.mxu0 0.0
      %2057 = vmatprep.subr.mxu0 0.0
      %2058 = vmatpush1.msra.mxu0 0.0
      %2059 = vmatprep.subr.mxu0 0.0
      %2060 = vmatpush1.msra.mxu0 0.0
      %2061 = vmatprep.subr.mxu0 0.0
      %2062 = vmatpush1.msra.mxu0 0.0
      %2063 = vmatprep.subr.mxu0 0.0
      %2064 = vmatpush1.msra.mxu0 0.0
      %2065 = vmatprep.subr.mxu0 0.0
      %2066 = vmatpush1.msra.mxu0 0.0
      %2067 = vmatprep.subr.mxu0 0.0
      %2068 = vmatpush1.msra.mxu0 0.0
      %2069 = vmatprep.subr.mxu0 0.0
      %2070 = vmatpush1.msra.mxu0 0.0
      %2071 = vmatprep.subr.mxu0 0.0
      %2072 = vmatpush1.msra.mxu0 0.0
      %2073 = vmatprep.subr.mxu0 0.0
      %2074 = vmatpush1.msra.mxu0 0.0
      %2075 = vmatprep.subr.mxu0 0.0
      %2076 = vmatpush1.msra.mxu0 0.0
      %2077 = vmatprep.subr.mxu0 0.0
      %2078 = vmatpush1.msra.mxu0 0.0
      %2079 = vmatprep.subr.mxu0 0.0
      %2080 = vmatpush1.msra.mxu0 0.0
      %2081 = vmatprep.subr.mxu0 0.0
      %2082 = vmatpush1.msra.mxu0 0.0
      %2083 = vmatprep.subr.mxu0 0.0
      %2084 = vmatpush1.msra.mxu0 0.0
      %2085 = vmatprep.subr.mxu0 0.0
      %2086 = vmatpush1.msra.mxu0 0.0
      %2087 = vmatprep.subr.mxu0 0.0
      %2088 = vmatpush1.msra.mxu0 0.0
      %2089 = vmatprep.subr.mxu0 0.0
      %2090 = vmatpush1.msra.mxu0 0.0
      %2091 = vmatprep.subr.mxu0 0.0
      %2092 = vmatpush1.msra.mxu0 0.0
      %2093 = vmatprep.subr.mxu0 0.0
      %2094 = vmatpush1.msra.mxu0 0.0
      %2095 = vmatprep.subr.mxu0 0.0
      %2096 = vmatpush1.msra.mxu0 0.0
      %2097 = vmatprep.subr.mxu0 0.0
      %2098 = vmatpush1.msra.mxu0 0.0
      %2099 = vmatprep.subr.mxu0 0.0
      %2100 = vmatpush1.msra.mxu0 0.0
      %2101 = vmatprep.subr.mxu0 0.0
      %2102 = vmatpush1.msra.mxu0 0.0
      %2103 = vmatprep.subr.mxu0 0.0
      %2104 = vmatpush1.msra.mxu0 0.0
      %2105 = vmatprep.mubr.f32.mxu0 0.0
      %2106 = vmatmul.mubr.f32.gmra.mrb[0].mxu0 %v2036
      %v2107 = vpop.f32.mrb[0].mxu0
      %v2108 = vadd.f32 0.0, %v2107
      %v2109 = vpop.f32.mrb[0].mxu0
      %2110 = vdwg.mxu0
      %v2111 = vmul.f32 %v2108, 0.001953125
      %2113 = vset.pattern.permute.xlu0 0
      %2114 = vperm.xlu0 %2113, %v2111
      %v2115 = vpop.permute.xlu0 %2114
      %v2117 = vsub.f32 %v1768, %v2115
      %v2118 = vsub.f32 %v1769, %v2115
      %v2119 = vsub.f32 %v1770, %v2115
      %v2120 = vmul.f32 %v2117, %v2117
      %v2121 = vmul.f32 %v2118, %v2118
      %v2122 = vmul.f32 %v2119, %v2119
      %2123 = vmatprep.subr.mxu0 0.0
      %2124 = vmatpush1.msra.mxu0 %v1771
      %2125 = vmatprep.subr.mxu0 0.0
      %2126 = vmatpush1.msra.mxu0 %v1772
      %2127 = vmatprep.subr.mxu0 0.0
      %2128 = vmatpush1.msra.mxu0 %v1773
      %2129 = vmatprep.subr.mxu0 0.0
      %2130 = vmatpush1.msra.mxu0 %v1774
      %2131 = vmatprep.subr.mxu0 0.0
      %2132 = vmatpush1.msra.mxu0 %v1775
      %2133 = vmatprep.subr.mxu0 0.0
      %2134 = vmatpush1.msra.mxu0 %v1776
      %2135 = vmatprep.subr.mxu0 0.0
      %2136 = vmatpush1.msra.mxu0 %v1777
      %2137 = vmatprep.subr.mxu0 0.0
      %2138 = vmatpush1.msra.mxu0 %v1778
      %2139 = vmatprep.subr.mxu0 0.0
      %2140 = vmatpush1.msra.mxu0 %v1779
      %2141 = vmatprep.subr.mxu0 0.0
      %2142 = vmatpush1.msra.mxu0 %v1780
      %2143 = vmatprep.subr.mxu0 0.0
      %2144 = vmatpush1.msra.mxu0 %v1781
      %2145 = vmatprep.subr.mxu0 0.0
      %2146 = vmatpush1.msra.mxu0 %v1782
      %2147 = vmatprep.subr.mxu0 0.0
      %2148 = vmatpush1.msra.mxu0 %v1783
      %2149 = vmatprep.subr.mxu0 0.0
      %2150 = vmatpush1.msra.mxu0 %v1784
      %2151 = vmatprep.subr.mxu0 0.0
      %2152 = vmatpush1.msra.mxu0 %v1785
      %2153 = vmatprep.subr.mxu0 0.0
      %2154 = vmatpush1.msra.mxu0 %v1786
      %2155 = vmatprep.subr.mxu0 0.0
      %2156 = vmatpush1.msra.mxu0 %v1787
      %2157 = vmatprep.subr.mxu0 0.0
      %2158 = vmatpush1.msra.mxu0 %v1788
      %2159 = vmatprep.subr.mxu0 0.0
      %2160 = vmatpush1.msra.mxu0 %v1789
      %2161 = vmatprep.subr.mxu0 0.0
      %2162 = vmatpush1.msra.mxu0 %v1790
      %2163 = vmatprep.subr.mxu0 0.0
      %2164 = vmatpush1.msra.mxu0 %v1791
      %2165 = vmatprep.subr.mxu0 0.0
      %2166 = vmatpush1.msra.mxu0 %v1792
      %2167 = vmatprep.subr.mxu0 0.0
      %2168 = vmatpush1.msra.mxu0 %v1793
      %2169 = vmatprep.subr.mxu0 0.0
      %2170 = vmatpush1.msra.mxu0 %v1794
      %2171 = vmatprep.subr.mxu0 0.0
      %2172 = vmatpush1.msra.mxu0 %v1795
      %2173 = vmatprep.subr.mxu0 0.0
      %2174 = vmatpush1.msra.mxu0 %v1796
      %2175 = vmatprep.subr.mxu0 0.0
      %2176 = vmatpush1.msra.mxu0 %v1797
      %2177 = vmatprep.subr.mxu0 0.0
      %2178 = vmatpush1.msra.mxu0 %v1798
      %2179 = vmatprep.subr.mxu0 0.0
      %2180 = vmatpush1.msra.mxu0 %v1799
      %2181 = vmatprep.subr.mxu0 0.0
      %2182 = vmatpush1.msra.mxu0 %v1800
      %2183 = vmatprep.subr.mxu0 0.0
      %2184 = vmatpush1.msra.mxu0 %v1801
      %2185 = vmatprep.subr.mxu0 0.0
      %2186 = vmatpush1.msra.mxu0 %v1802
      %2187 = vmatprep.mubr.f32.mxu0 %v2121
      %2188 = vmatmul.mubr.f32.gmra.mrb[0].mxu0 %v2120
      %v2189 = vpop.f32.mrb[0].mxu0
      %v2190 = vadd.f32 0.0, %v2189
      %v2191 = vpop.f32.mrb[0].mxu0
      %2192 = vdwg.mxu0
      %2193 = vmatprep.subr.mxu0 0.0
      %2194 = vmatpush1.msra.mxu0 %v1803
      %2195 = vmatprep.subr.mxu0 0.0
      %2196 = vmatpush1.msra.mxu0 %v1804
      %2197 = vmatprep.subr.mxu0 0.0
      %2198 = vmatpush1.msra.mxu0 %v1805
      %2199 = vmatprep.subr.mxu0 0.0
      %2200 = vmatpush1.msra.mxu0 %v1806
      %2201 = vmatprep.subr.mxu0 0.0
      %2202 = vmatpush1.msra.mxu0 %v1807
      %2203 = vmatprep.subr.mxu0 0.0
      %2204 = vmatpush1.msra.mxu0 %v1808
      %2205 = vmatprep.subr.mxu0 0.0
      %2206 = vmatpush1.msra.mxu0 %v1809
      %2207 = vmatprep.subr.mxu0 0.0
      %2208 = vmatpush1.msra.mxu0 %v1810
      %2209 = vmatprep.subr.mxu0 0.0
      %2210 = vmatpush1.msra.mxu0 %v1811
      %2211 = vmatprep.subr.mxu0 0.0
      %2212 = vmatpush1.msra.mxu0 %v1812
      %2213 = vmatprep.subr.mxu0 0.0
      %2214 = vmatpush1.msra.mxu0 %v1813
      %2215 = vmatprep.subr.mxu0 0.0
      %2216 = vmatpush1.msra.mxu0 %v1814
      %2217 = vmatprep.subr.mxu0 0.0
      %2218 = vmatpush1.msra.mxu0 %v1815
      %2219 = vmatprep.subr.mxu0 0.0
      %2220 = vmatpush1.msra.mxu0 %v1816
      %2221 = vmatprep.subr.mxu0 0.0
      %2222 = vmatpush1.msra.mxu0 %v1817
      %2223 = vmatprep.subr.mxu0 0.0
      %2224 = vmatpush1.msra.mxu0 %v1818
      %2225 = vmatprep.subr.mxu0 0.0
      %2226 = vmatpush1.msra.mxu0 0.0
      %2227 = vmatprep.subr.mxu0 0.0
      %2228 = vmatpush1.msra.mxu0 0.0
      %2229 = vmatprep.subr.mxu0 0.0
      %2230 = vmatpush1.msra.mxu0 0.0
      %2231 = vmatprep.subr.mxu0 0.0
      %2232 = vmatpush1.msra.mxu0 0.0
      %2233 = vmatprep.subr.mxu0 0.0
      %2234 = vmatpush1.msra.mxu0 0.0
      %2235 = vmatprep.subr.mxu0 0.0
      %2236 = vmatpush1.msra.mxu0 0.0
      %2237 = vmatprep.subr.mxu0 0.0
      %2238 = vmatpush1.msra.mxu0 0.0
      %2239 = vmatprep.subr.mxu0 0.0
      %2240 = vmatpush1.msra.mxu0 0.0
      %2241 = vmatprep.subr.mxu0 0.0
      %2242 = vmatpush1.msra.mxu0 0.0
      %2243 = vmatprep.subr.mxu0 0.0
      %2244 = vmatpush1.msra.mxu0 0.0
      %2245 = vmatprep.subr.mxu0 0.0
      %2246 = vmatpush1.msra.mxu0 0.0
      %2247 = vmatprep.subr.mxu0 0.0
      %2248 = vmatpush1.msra.mxu0 0.0
      %2249 = vmatprep.subr.mxu0 0.0
      %2250 = vmatpush1.msra.mxu0 0.0
      %2251 = vmatprep.subr.mxu0 0.0
      %2252 = vmatpush1.msra.mxu0 0.0
      %2253 = vmatprep.subr.mxu0 0.0
      %2254 = vmatpush1.msra.mxu0 0.0
      %2255 = vmatprep.subr.mxu0 0.0
      %2256 = vmatpush1.msra.mxu0 0.0
      %2257 = vmatprep.mubr.f32.mxu0 0.0
      %2258 = vmatmul.mubr.f32.gmra.mrb[0].mxu0 %v2122
      %v2259 = vpop.f32.mrb[0].mxu0
      %v2260 = vadd.f32 %v2190, %v2259
      %v2261 = vpop.f32.mrb[0].mxu0
      %2262 = vdwg.mxu0
      %2263 = vmatprep.subr.mxu0 0.0
      %2264 = vmatpush1.msra.mxu0 %v2260
      %2265 = vmatprep.subr.mxu0 0.0
      %2266 = vmatpush1.msra.mxu0 0.0
      %2267 = vmatprep.subr.mxu0 0.0
      %2268 = vmatpush1.msra.mxu0 0.0
      %2269 = vmatprep.subr.mxu0 0.0
      %2270 = vmatpush1.msra.mxu0 0.0
      %2271 = vmatprep.subr.mxu0 0.0
      %2272 = vmatpush1.msra.mxu0 0.0
      %2273 = vmatprep.subr.mxu0 0.0
      %2274 = vmatpush1.msra.mxu0 0.0
      %2275 = vmatprep.subr.mxu0 0.0
      %2276 = vmatpush1.msra.mxu0 0.0
      %2277 = vmatprep.subr.mxu0 0.0
      %2278 = vmatpush1.msra.mxu0 0.0
      %2279 = vmatprep.subr.mxu0 0.0
      %2280 = vmatpush1.msra.mxu0 0.0
      %2281 = vmatprep.subr.mxu0 0.0
      %2282 = vmatpush1.msra.mxu0 0.0
      %2283 = vmatprep.subr.mxu0 0.0
      %2284 = vmatpush1.msra.mxu0 0.0
      %2285 = vmatprep.subr.mxu0 0.0
      %2286 = vmatpush1.msra.mxu0 0.0
      %2287 = vmatprep.subr.mxu0 0.0
      %2288 = vmatpush1.msra.mxu0 0.0
      %2289 = vmatprep.subr.mxu0 0.0
      %2290 = vmatpush1.msra.mxu0 0.0
      %2291 = vmatprep.subr.mxu0 0.0
      %2292 = vmatpush1.msra.mxu0 0.0
      %2293 = vmatprep.subr.mxu0 0.0
      %2294 = vmatpush1.msra.mxu0 0.0
      %2295 = vmatprep.subr.mxu0 0.0
      %2296 = vmatpush1.msra.mxu0 0.0
      %2297 = vmatprep.subr.mxu0 0.0
      %2298 = vmatpush1.msra.mxu0 0.0
      %2299 = vmatprep.subr.mxu0 0.0
      %2300 = vmatpush1.msra.mxu0 0.0
      %2301 = vmatprep.subr.mxu0 0.0
      %2302 = vmatpush1.msra.mxu0 0.0
      %2303 = vmatprep.subr.mxu0 0.0
      %2304 = vmatpush1.msra.mxu0 0.0
      %2305 = vmatprep.subr.mxu0 0.0
      %2306 = vmatpush1.msra.mxu0 0.0
      %2307 = vmatprep.subr.mxu0 0.0
      %2308 = vmatpush1.msra.mxu0 0.0
      %2309 = vmatprep.subr.mxu0 0.0
      %2310 = vmatpush1.msra.mxu0 0.0
      %2311 = vmatprep.subr.mxu0 0.0
      %2312 = vmatpush1.msra.mxu0 0.0
      %2313 = vmatprep.subr.mxu0 0.0
      %2314 = vmatpush1.msra.mxu0 0.0
      %2315 = vmatprep.subr.mxu0 0.0
      %2316 = vmatpush1.msra.mxu0 0.0
      %2317 = vmatprep.subr.mxu0 0.0
      %2318 = vmatpush1.msra.mxu0 0.0
      %2319 = vmatprep.subr.mxu0 0.0
      %2320 = vmatpush1.msra.mxu0 0.0
      %2321 = vmatprep.subr.mxu0 0.0
      %2322 = vmatpush1.msra.mxu0 0.0
      %2323 = vmatprep.subr.mxu0 0.0
      %2324 = vmatpush1.msra.mxu0 0.0
      %2325 = vmatprep.subr.mxu0 0.0
      %2326 = vmatpush1.msra.mxu0 0.0
      %2327 = vmatprep.mubr.f32.mxu0 0.0
      %2328 = vmatmul.mubr.f32.gmra.mrb[0].mxu0 %v1963
      %v2329 = vpop.f32.mrb[0].mxu0
      %v2330 = vadd.f32 0.0, %v2329
      %v2331 = vpop.f32.mrb[0].mxu0
      %2332 = vdwg.mxu0
      %v2333 = vmul.f32 %v2330, 0.001953125
      %v2334 = vadd.f32 %v2333, 1e-05
      %v2335 = vrsqrt.pop %v2334
      %v2337 = vsel %vm304, %v2335, 0
      %2339 = vmatprep.subr.mxu0 0.0
      %2340 = vmatpush1.msra.mxu0 %v2337
      %2341 = vmatprep.subr.mxu0 0.0
      %2342 = vmatpush1.msra.mxu0 0.0
      %2343 = vmatprep.subr.mxu0 0.0
      %2344 = vmatpush1.msra.mxu0 0.0
      %2345 = vmatprep.subr.mxu0 0.0
      %2346 = vmatpush1.msra.mxu0 0.0
      %2347 = vmatprep.subr.mxu0 0.0
      %2348 = vmatpush1.msra.mxu0 0.0
      %2349 = vmatprep.subr.mxu0 0.0
      %2350 = vmatpush1.msra.mxu0 0.0
      %2351 = vmatprep.subr.mxu0 0.0
      %2352 = vmatpush1.msra.mxu0 0.0
      %2353 = vmatprep.subr.mxu0 0.0
      %2354 = vmatpush1.msra.mxu0 0.0
      %2355 = vmatprep.subr.mxu0 0.0
      %2356 = vmatpush1.msra.mxu0 0.0
      %2357 = vmatprep.subr.mxu0 0.0
      %2358 = vmatpush1.msra.mxu0 0.0
      %2359 = vmatprep.subr.mxu0 0.0
      %2360 = vmatpush1.msra.mxu0 0.0
      %2361 = vmatprep.subr.mxu0 0.0
      %2362 = vmatpush1.msra.mxu0 0.0
      %2363 = vmatprep.subr.mxu0 0.0
      %2364 = vmatpush1.msra.mxu0 0.0
      %2365 = vmatprep.subr.mxu0 0.0
      %2366 = vmatpush1.msra.mxu0 0.0
      %2367 = vmatprep.subr.mxu0 0.0
      %2368 = vmatpush1.msra.mxu0 0.0
      %2369 = vmatprep.subr.mxu0 0.0
      %2370 = vmatpush1.msra.mxu0 0.0
      %2371 = vmatprep.subr.mxu0 0.0
      %2372 = vmatpush1.msra.mxu0 0.0
      %2373 = vmatprep.subr.mxu0 0.0
      %2374 = vmatpush1.msra.mxu0 0.0
      %2375 = vmatprep.subr.mxu0 0.0
      %2376 = vmatpush1.msra.mxu0 0.0
      %2377 = vmatprep.subr.mxu0 0.0
      %2378 = vmatpush1.msra.mxu0 0.0
      %2379 = vmatprep.subr.mxu0 0.0
      %2380 = vmatpush1.msra.mxu0 0.0
      %2381 = vmatprep.subr.mxu0 0.0
      %2382 = vmatpush1.msra.mxu0 0.0
      %2383 = vmatprep.subr.mxu0 0.0
      %2384 = vmatpush1.msra.mxu0 0.0
      %2385 = vmatprep.subr.mxu0 0.0
      %2386 = vmatpush1.msra.mxu0 0.0
      %2387 = vmatprep.subr.mxu0 0.0
      %2388 = vmatpush1.msra.mxu0 0.0
      %2389 = vmatprep.subr.mxu0 0.0
      %2390 = vmatpush1.msra.mxu0 0.0
      %2391 = vmatprep.subr.mxu0 0.0
      %2392 = vmatpush1.msra.mxu0 0.0
      %2393 = vmatprep.subr.mxu0 0.0
      %2394 = vmatpush1.msra.mxu0 0.0
      %2395 = vmatprep.subr.mxu0 0.0
      %2396 = vmatpush1.msra.mxu0 0.0
      %2397 = vmatprep.subr.mxu0 0.0
      %2398 = vmatpush1.msra.mxu0 0.0
      %2399 = vmatprep.subr.mxu0 0.0
      %2400 = vmatpush1.msra.mxu0 0.0
      %2401 = vmatprep.subr.mxu0 0.0
      %2402 = vmatpush1.msra.mxu0 0.0
      %2403 = vmatprep.mubr.f32.mxu0 0.0
      %2404 = vmatmul.mubr.f32.gmra.mrb[0].mxu0 %v2036
      %v2405 = vpop.f32.mrb[0].mxu0
      %v2406 = vadd.f32 0.0, %v2405
      %v2407 = vpop.f32.mrb[0].mxu0
      %2408 = vdwg.mxu0
      %v2409 = vld [vmem:[%s5] sm:$0xff]
      %v2410 = vmul.f32 %v2409, %v2406
      %v2411 = vld [vmem:[%s6] sm:$0xff]
      %v2412 = vmul.f32 %v2111, %v2410
      %v2413 = vsub.f32 %v2411, %v2412
      %2415 = vset.pattern.permute.xlu0 0
      %2416 = vperm.xlu0 %2415, %v2410
      %v2417 = vpop.permute.xlu0 %2416
      %v2419 = vmul.f32 %v1768, %v2417
      %v2420 = vmul.f32 %v1769, %v2417
      %v2421 = vmul.f32 %v1770, %v2417
      %2423 = vset.pattern.permute.xlu0 0
      %2424 = vperm.xlu0 %2423, %v2413
      %v2425 = vpop.permute.xlu0 %2424
      %v2427 = vadd.f32 %v2419, %v2425
      %v2428 = vadd.f32 %v2420, %v2425
      %v2429 = vadd.f32 %v2421, %v2425
      %v2430 = vmax.f32 %v2427, 0.0
      %v2431 = vmax.f32 %v2428, 0.0
      %v2432 = vmax.f32 %v2429, 0.0
      %2433 = vst [vmem:[%s278] sm:$0xff] %v2430
      %2434 = vst [vmem:[%s278 + $0x8] sm:$0xff] %v2431
      %2435 = vst [vmem:[%s278 + $0x10] sm:$0xff] %v2432
      %p2436 = scmp.lt.s32.totalorder %s18, 1
      %s2437 = scalar_select %p2436, %s18, 1
      %s2438 = smul.addr %s2437, 3
      %s2439 = smul.addr %s2438, 8
      %s2440 = scalar_lea.vmem %s7, %s2439
      // Predicated region
      $region49: #{conv_module_forward.1} parent=47 // pred_check
        %p2441 = pneg %p188
      $region50: #{conv_module_forward.1} parent=47 // pred_check_branch
        %2443 = sbr.rel (%p2441) target = $region52
      $region51: #{conv_module_forward.1} parent=47 // pred_region
        _
      $region52: #{conv_module_forward.1} parent=47 // pred_fallthru
        _
    $region48: #{conv_module_forward.1} parent=5 // pred_fallthru
      _
    %p2444 = scmp.le.s32.totalorder 2, %s13
    // Predicated region
    $region53: #{conv_module_forward.1} parent=5 // pred_check
      %p2445 = pneg %p2444
    $region54: #{conv_module_forward.1} parent=5 // pred_check_branch
      %2447 = sbr.rel (%p2445) target = $region56
    $region55: #{conv_module_forward.1} parent=5 // pred_region
      %s2448 = ssub.s32 %s13, 2
      // Predicated region
      $region57: #{conv_module_forward.1} parent=55 // pred_check
        %p2449 = pneg %p194
      $region58: #{conv_module_forward.1} parent=55 // pred_check_branch
        %2451 = sbr.rel (%p2449) target = $region60
      $region59: #{conv_module_forward.1} parent=55 // pred_region
        %p2452 = scmp.lt.s32.totalorder %s19, 1
        %s2453 = scalar_select %p2452, %s19, 1
        %s2454 = smul.addr %s2453, 3
        %s2455 = smul.addr %s2454, 8
        %s2456 = scalar_lea.vmem %s7, %s2455
      $region60: #{conv_module_forward.1} parent=55 // pred_fallthru
        _
    $region56: #{conv_module_forward.1} parent=5 // pred_fallthru
      _
  $region6: #{conv_module_forward.1} parent=0 // loop_footer
    %s17 = sadd.s32 1, %s13
  $region7: #{conv_module_forward.1} parent=0 // loop_footer_branch
    %12 = sbr.rel target = $region3
  $region8: #{conv_module_forward.1} parent=0 // loop_exit
    _

</llo_original>
